<compile_context>
chip_gen: v5e
topology: v5e:2x2
jax: 0.10.0
libtpu: 0.0.40
codegen_flags: <defaults>
</compile_context>

<pallas_src>
import jax
import jax.numpy as jnp
from jax.experimental import pallas as pl
from jax.experimental.pallas import tpu as pltpu

EPS = 1e-9

# With lane-dense layouts a 1024-row tile keeps peak live VMEM well under
# ~20 MiB (inputs double-buffered + f32 activations), comfortable on v7x's
# 64 MiB VMEM while still filling the MXU / HBM pipeline on v5e / v6e.
MAX_B_TILE = 1024
VMEM_LIMIT_BYTES = 40 * 1024 * 1024


def _make_kernel(b_total, b_tile, needs_mask):
    """Builds the fused DIN kernel; static config is baked in at trace time."""

    def kernel(hist_ref, candT_ref, ucx_ref,
               au_wbd_ref, au_b1_ref, au_w2e_ref, au_b2_ref,
               fc1_wucx_ref, fc1_wp_ref, fc1_b_ref,
               fc2_w_ref, fc2_b_ref, out_w_ref, out_b_ref,
               au_alpha_ref, mlp_alpha_ref, out_ref):
        f32 = jnp.float32
        bf16 = jnp.bfloat16

        au_alpha = au_alpha_ref[0, 0]      # SMEM scalars
        mlp_alpha = mlp_alpha_ref[0, 0]

        if needs_mask:
            # Only traced when B is not a multiple of the tile: keep padded
            # rows out of Dice's batch statistics.
            row_start = pl.program_id(0) * b_tile
            n_valid_i = b_total - row_start
            rows = jax.lax.broadcasted_iota(jnp.int32, (b_tile, 1), 0)
            mask = (rows < n_valid_i).astype(f32)
            n_valid = jnp.clip(n_valid_i, 1, b_tile).astype(f32)
        else:
            mask = None
            n_valid = jnp.float32(b_tile)

        def sigmoid(x):
            # One EUP push instead of exp + divide.
            return 0.5 * jnp.tanh(0.5 * x) + 0.5

        def dice(x, alpha):
            # Training-mode batch statistics over axis 0 (per column), unbiased
            # variance; gate simplified to x * (alpha + (1 - alpha) * p).
            if mask is None:
                mean = jnp.mean(x, axis=0, keepdims=True)
                diff = x - mean
            else:
                mean = jnp.sum(x * mask, axis=0, keepdims=True) / n_valid
                diff = (x - mean) * mask
            var = (jnp.sum(diff * diff, axis=0, keepdims=True)
                   / jnp.maximum(n_valid - 1.0, 1.0))
            p = sigmoid((x - mean) * jax.lax.rsqrt(var + EPS))
            return x * (alpha + (1.0 - alpha) * p)

        hist_bf = hist_ref[...]                       # (Bt, T*G) bf16
        candT_bf = candT_ref[...]                     # (Bt, T*G) bf16
        prod_bf = hist_bf * candT_bf                  # bf16 product term

        # --- ActivationUnit for ALL timesteps as one block-diagonal matmul ---
        # columns [t*A:(t+1)*A] of `lin` == Linear(cat([h_t, h_t*c, c])) + b1
        au_in = jnp.concatenate([hist_bf, prod_bf, candT_bf], axis=-1)  # (Bt, 3*T*G)
        lin = (jnp.dot(au_in, au_wbd_ref[...], preferred_element_type=f32)
               + au_b1_ref[...])                      # (Bt, T*A) lane-dense
        a = dice(lin, au_alpha)                       # (Bt, T*A)

        # Attention score for timestep t, replicated across its G lanes:
        # att_exp[:, t*G+g] == a[:, t*A:(t+1)*A] @ w2 + b2  for every g.
        att_exp = (jnp.dot(a.astype(bf16), au_w2e_ref[...],
                           preferred_element_type=f32)
                   + au_b2_ref[...])                  # (Bt, T*G)
        weighted = att_exp * hist_bf.astype(f32)      # (Bt, T*G) = att_t * h_t

        # --- MLP: FC1 as two matmuls. The sum over T of the weighted pooling
        # is folded into the second matmul via the T-stacked pooled weight:
        # weighted @ tile(Wp, T) == (sum_t att_t * h_t) @ Wp.
        fc1 = (jnp.dot(ucx_ref[...], fc1_wucx_ref[...],
                       preferred_element_type=f32)
               + jnp.dot(weighted.astype(bf16), fc1_wp_ref[...],
                         preferred_element_type=f32)
               + fc1_b_ref[...])                      # (Bt, 200)
        h1 = dice(fc1, mlp_alpha)
        fc2 = (jnp.dot(h1.astype(bf16), fc2_w_ref[...],
                       preferred_element_type=f32)
               + fc2_b_ref[...])                      # (Bt, 80)
        h2 = dice(fc2, mlp_alpha)

        # OutputLayer('binary'): Linear(80 -> 1) + sigmoid as a VPU lane reduce
        # (N=1 matmul would waste an MXU pass).
        logit = (jnp.sum(h2 * out_w_ref[...], axis=-1, keepdims=True)
                 + out_b_ref[...])                    # (Bt, 1)
        out_ref[...] = sigmoid(logit)                 # compact (Bt, 1) write

    return kernel


def init_params(key, u_dim, c_dim, g_dim, linear_dim=36, fc_dims=(200, 80)):
    """Deterministic synthetic parameters mirroring the PyTorch module shapes.

    All stored in f32 in the "natural" per-layer layout; the wrapper packs the
    block-diagonal / stacked bf16 forms actually fed to the kernel.
    """
    ks = jax.random.split(key, 16)

    def w(k, shape, scale=0.05):
        return scale * jax.random.normal(k, shape, jnp.float32)

    return {
        # ActivationUnit: Linear(3G -> 36) split [history | product | cand]
        "au_w1h": w(ks[0], (g_dim, linear_dim)),
        "au_w1p": w(ks[1], (g_dim, linear_dim)),
        "au_w1c": w(ks[2], (g_dim, linear_dim)),
        "au_b1": w(ks[3], (1, linear_dim)),
        "au_w2": w(ks[4], (1, linear_dim)),          # Linear(36 -> 1)
        "au_b2": w(ks[5], (1, 1)),
        # MLP layer 1: Linear(U + G + G + C -> 200) split by concat segment
        "fc1_wu": w(ks[6], (u_dim, fc_dims[0])),
        "fc1_wp": w(ks[7], (g_dim, fc_dims[0])),
        "fc1_wc": w(ks[8], (g_dim, fc_dims[0])),
        "fc1_wx": w(ks[9], (c_dim, fc_dims[0])),
        "fc1_b": w(ks[10], (1, fc_dims[0])),
        # MLP layer 2: Linear(200 -> 80)
        "fc2_w": w(ks[11], (fc_dims[0], fc_dims[1])),
        "fc2_b": w(ks[12], (1, fc_dims[1])),
        # OutputLayer('binary'): Linear(80 -> 1) + sigmoid
        "out_w": w(ks[13], (1, fc_dims[1])),
        "out_b": w(ks[14], (1, 1)),
        # Dice alphas (init 0), passed through SMEM
        "au_alpha": jnp.zeros((1, 1), jnp.float32),
        "mlp_alpha": jnp.zeros((1, 1), jnp.float32),
    }


def _const_spec(arr):
    """Full-extent block with a constant index_map -> stays VMEM-resident."""
    zeros = (0,) * arr.ndim
    return pl.BlockSpec(arr.shape, lambda i: zeros)


def _smem_scalar_spec():
    return pl.BlockSpec((1, 1), lambda i: (0, 0),
                        memory_space=pltpu.MemorySpace.SMEM)


def din_forward(history_feats, candidate_feat, user_profile_feat, context_feat,
                params, *, max_b_tile=MAX_B_TILE):
    B, T, G = history_feats.shape
    U = user_profile_feat.shape[-1]
    C = context_feat.shape[-1]
    A = params["au_w1h"].shape[-1]
    f32, bf16 = jnp.float32, jnp.bfloat16

    # --- batch tiling (single tile keeps Dice stats identical to reference) --
    if B <= max_b_tile:
        b_tile, num_tiles, b_pad = B, 1, B
    else:
        b_tile = max_b_tile                       # multiple of 8
        num_tiles = pl.cdiv(B, b_tile)
        b_pad = num_tiles * b_tile
    needs_mask = b_pad != B

    # --- lane-dense bf16 inputs ----------------------------------------------
    hist_flat = history_feats.reshape(B, T * G).astype(bf16)          # (B, T*G)
    cand_tiled = jnp.tile(candidate_feat, (1, T)).astype(bf16)        # (B, T*G)
    ucx = jnp.concatenate(
        [user_profile_feat, candidate_feat, context_feat], axis=-1
    ).astype(bf16)                                                    # (B, U+G+C)
    if needs_mask:
        pad = b_pad - B
        hist_flat = jnp.pad(hist_flat, ((0, pad), (0, 0)))
        cand_tiled = jnp.pad(cand_tiled, ((0, pad), (0, 0)))
        ucx = jnp.pad(ucx, ((0, pad), (0, 0)))

    # --- pack weights into block-diagonal / stacked kernel forms -------------
    eye_T = jnp.eye(T, dtype=f32)
    au_wbd = jnp.concatenate(
        [jnp.kron(eye_T, params["au_w1h"]),
         jnp.kron(eye_T, params["au_w1p"]),
         jnp.kron(eye_T, params["au_w1c"])], axis=0).astype(bf16)     # (3*T*G, T*A)
    au_b1_t = jnp.tile(params["au_b1"], (1, T))                       # (1, T*A)
    au_w2e = jnp.kron(
        eye_T, jnp.outer(params["au_w2"].reshape(-1), jnp.ones((G,), f32))
    ).astype(bf16)                                                    # (T*A, T*G)
    fc1_wucx = jnp.concatenate(
        [params["fc1_wu"], params["fc1_wc"], params["fc1_wx"]], axis=0
    ).astype(bf16)                                                    # (U+G+C, 200)
    fc1_wp_stack = jnp.tile(params["fc1_wp"], (T, 1)).astype(bf16)    # (T*G, 200)
    fc2_w = params["fc2_w"].astype(bf16)

    weights = [au_wbd, au_b1_t, au_w2e, params["au_b2"],
               fc1_wucx, fc1_wp_stack, params["fc1_b"],
               fc2_w, params["fc2_b"], params["out_w"], params["out_b"]]

    feat_specs = [
        pl.BlockSpec((b_tile, T * G), lambda i: (i, 0)),
        pl.BlockSpec((b_tile, T * G), lambda i: (i, 0)),
        pl.BlockSpec((b_tile, U + G + C), lambda i: (i, 0)),
    ]
    weight_specs = [_const_spec(w) for w in weights]
    alpha_specs = [_smem_scalar_spec(), _smem_scalar_spec()]

    out = pl.pallas_call(
        _make_kernel(B, b_tile, needs_mask),
        grid=(num_tiles,),
        out_shape=jax.ShapeDtypeStruct((b_pad, 1), jnp.float32),
        in_specs=feat_specs + weight_specs + alpha_specs,
        out_specs=pl.BlockSpec((b_tile, 1), lambda i: (i, 0)),
        compiler_params=pltpu.CompilerParams(
            dimension_semantics=("parallel",),
            vmem_limit_bytes=VMEM_LIMIT_BYTES),
    )(hist_flat, cand_tiled, ucx, *weights,
      params["au_alpha"], params["mlp_alpha"])

    return out[:B]


if __name__ == "__main__":
    B, T = 8, 8                 # batch, history length
    U, C, G = 8, 8, 16          # user / context / goods embedding dims

    key = jax.random.PRNGKey(0)
    k1, k2, k3, k4, kp = jax.random.split(key, 5)
    history_feats = jax.random.normal(k1, (B, T, G), jnp.float32)
    candidate_feat = jax.random.normal(k2, (B, G), jnp.float32)
    user_profile_feat = jax.random.normal(k3, (B, U), jnp.float32)
    context_feat = jax.random.normal(k4, (B, C), jnp.float32)

    params = init_params(kp, U, C, G)

    out = din_forward(history_feats, candidate_feat, user_profile_feat,
                      context_feat, params)
    out = jax.block_until_ready(out)
    assert out.shape == (B, 1)
    assert bool(jnp.all(jnp.isfinite(out)))
    assert bool(jnp.all((out >= 0.0) & (out <= 1.0)))
    print("KERNEL_OK")
</pallas_src>

<mosaic_0001>
module attributes {stable_mosaic.version = 11 : i64} {
  func.func @kernel(%arg0: i32, %arg1: memref<8x128xbf16, #tpu.memory_space<vmem>>, %arg2: memref<8x128xbf16, #tpu.memory_space<vmem>>, %arg3: memref<8x32xbf16, #tpu.memory_space<vmem>>, %arg4: memref<384x288xbf16, #tpu.memory_space<vmem>>, %arg5: memref<1x288xf32, #tpu.memory_space<vmem>>, %arg6: memref<288x128xbf16, #tpu.memory_space<vmem>>, %arg7: memref<1x1xf32, #tpu.memory_space<vmem>>, %arg8: memref<32x200xbf16, #tpu.memory_space<vmem>>, %arg9: memref<128x200xbf16, #tpu.memory_space<vmem>>, %arg10: memref<1x200xf32, #tpu.memory_space<vmem>>, %arg11: memref<200x80xbf16, #tpu.memory_space<vmem>>, %arg12: memref<1x80xf32, #tpu.memory_space<vmem>>, %arg13: memref<1x80xf32, #tpu.memory_space<vmem>>, %arg14: memref<1x1xf32, #tpu.memory_space<vmem>>, %arg15: memref<1x1xf32, #tpu.memory_space<smem>>, %arg16: memref<1x1xf32, #tpu.memory_space<smem>>, %arg17: memref<8x1xf32, #tpu.memory_space<vmem>>) attributes {dimension_semantics = [#tpu.dimension_semantics<parallel>], iteration_bounds = array<i64: 1>, scalar_prefetch = 0 : i64, scratch_operands = 0 : i64, tpu.core_type = #tpu.core_type<tc>, window_params = [{transform_indices = @transform_0, window_bounds = array<i64: 8, 128>}, {transform_indices = @transform_1, window_bounds = array<i64: 8, 128>}, {transform_indices = @transform_2, window_bounds = array<i64: 8, 32>}, {pipeline_mode = #tpu.pipeline_mode<synchronous>, transform_indices = @transform_3, window_bounds = array<i64: 384, 288>}, {pipeline_mode = #tpu.pipeline_mode<synchronous>, transform_indices = @transform_4, window_bounds = array<i64: 1, 288>}, {pipeline_mode = #tpu.pipeline_mode<synchronous>, transform_indices = @transform_5, window_bounds = array<i64: 288, 128>}, {pipeline_mode = #tpu.pipeline_mode<synchronous>, transform_indices = @transform_6, window_bounds = array<i64: 1, 1>}, {pipeline_mode = #tpu.pipeline_mode<synchronous>, transform_indices = @transform_7, window_bounds = array<i64: 32, 200>}, {pipeline_mode = #tpu.pipeline_mode<synchronous>, transform_indices = @transform_8, window_bounds = array<i64: 128, 200>}, {pipeline_mode = #tpu.pipeline_mode<synchronous>, transform_indices = @transform_9, window_bounds = array<i64: 1, 200>}, {pipeline_mode = #tpu.pipeline_mode<synchronous>, transform_indices = @transform_10, window_bounds = array<i64: 200, 80>}, {pipeline_mode = #tpu.pipeline_mode<synchronous>, transform_indices = @transform_11, window_bounds = array<i64: 1, 80>}, {pipeline_mode = #tpu.pipeline_mode<synchronous>, transform_indices = @transform_12, window_bounds = array<i64: 1, 80>}, {pipeline_mode = #tpu.pipeline_mode<synchronous>, transform_indices = @transform_13, window_bounds = array<i64: 1, 1>}, {transform_indices = @transform_14, window_bounds = array<i64: 1, 1>}, {transform_indices = @transform_15, window_bounds = array<i64: 1, 1>}, {transform_indices = @transform_16, window_bounds = array<i64: 8, 1>}]} {
    %c0 = arith.constant 0 : index
    %c0_0 = arith.constant 0 : index
    %0 = memref.load %arg15[%c0, %c0_0] : memref<1x1xf32, #tpu.memory_space<smem>>
    %c0_1 = arith.constant 0 : index
    %c0_2 = arith.constant 0 : index
    %1 = memref.load %arg16[%c0_1, %c0_2] : memref<1x1xf32, #tpu.memory_space<smem>>
    %c0_3 = arith.constant 0 : index
    %c0_4 = arith.constant 0 : index
    %2 = vector.load %arg1[%c0_3, %c0_4] : memref<8x128xbf16, #tpu.memory_space<vmem>>, vector<8x128xbf16>
    %c0_5 = arith.constant 0 : index
    %c0_6 = arith.constant 0 : index
    %3 = vector.load %arg2[%c0_5, %c0_6] : memref<8x128xbf16, #tpu.memory_space<vmem>>, vector<8x128xbf16>
    %4 = arith.mulf %2, %3 : vector<8x128xbf16>
    %5 = tpu.concatenate %2, %4, %3 in 1 : vector<8x128xbf16>, vector<8x128xbf16>, vector<8x128xbf16> -> vector<8x384xbf16>
    %c0_7 = arith.constant 0 : index
    %c0_8 = arith.constant 0 : index
    %6 = vector.load %arg4[%c0_7, %c0_8] : memref<384x288xbf16, #tpu.memory_space<vmem>>, vector<384x288xbf16>
    %cst = arith.constant dense<0.000000e+00> : vector<8x288xf32>
    %7 = tpu.matmul %5, %6, %cst {dimension_numbers = #tpu.dot_dimension_numbers<[1], [0], [0], [1], [0, 0, 1, 1], [], []>} : vector<8x384xbf16>, vector<384x288xbf16>, vector<8x288xf32> -> vector<8x288xf32>
    %c0_9 = arith.constant 0 : index
    %c0_10 = arith.constant 0 : index
    %8 = vector.load %arg5[%c0_9, %c0_10] : memref<1x288xf32, #tpu.memory_space<vmem>>, vector<1x288xf32>
    %9 = vector.broadcast %8 : vector<1x288xf32> to vector<8x288xf32>
    %10 = arith.addf %7, %9 : vector<8x288xf32>
    %cst_11 = arith.constant dense<0.000000e+00> : vector<288xf32>
    %11 = vector.multi_reduction <add>, %10, %cst_11 [0] : vector<8x288xf32> to vector<288xf32>
    %12 = vector.shape_cast %11 : vector<288xf32> to vector<1x288xf32>
    %cst_12 = arith.constant 8.000000e+00 : f32
    %13 = vector.broadcast %cst_12 : f32 to vector<1x288xf32>
    %14 = arith.divf %12, %13 : vector<1x288xf32>
    %15 = vector.broadcast %14 : vector<1x288xf32> to vector<8x288xf32>
    %16 = arith.subf %10, %15 : vector<8x288xf32>
    %17 = arith.mulf %16, %16 : vector<8x288xf32>
    %cst_13 = arith.constant dense<0.000000e+00> : vector<288xf32>
    %18 = vector.multi_reduction <add>, %17, %cst_13 [0] : vector<8x288xf32> to vector<288xf32>
    %19 = vector.shape_cast %18 : vector<288xf32> to vector<1x288xf32>
    %cst_14 = arith.constant 8.000000e+00 : f32
    %cst_15 = arith.constant 1.000000e+00 : f32
    %20 = arith.subf %cst_14, %cst_15 : f32
    %cst_16 = arith.constant 1.000000e+00 : f32
    %21 = arith.maximumf %20, %cst_16 : f32
    %22 = vector.broadcast %21 : f32 to vector<1x288xf32>
    %23 = arith.divf %19, %22 : vector<1x288xf32>
    %24 = vector.broadcast %14 : vector<1x288xf32> to vector<8x288xf32>
    %25 = arith.subf %10, %24 : vector<8x288xf32>
    %cst_17 = arith.constant 9.99999971E-10 : f32
    %26 = vector.broadcast %cst_17 : f32 to vector<1x288xf32>
    %27 = arith.addf %23, %26 : vector<1x288xf32>
    %28 = math.rsqrt %27 : vector<1x288xf32>
    %29 = vector.broadcast %28 : vector<1x288xf32> to vector<8x288xf32>
    %30 = arith.mulf %25, %29 : vector<8x288xf32>
    %cst_18 = arith.constant 5.000000e-01 : f32
    %31 = vector.broadcast %cst_18 : f32 to vector<8x288xf32>
    %32 = arith.mulf %31, %30 : vector<8x288xf32>
    %33 = math.tanh %32 : vector<8x288xf32>
    %cst_19 = arith.constant 5.000000e-01 : f32
    %34 = vector.broadcast %cst_19 : f32 to vector<8x288xf32>
    %35 = arith.mulf %34, %33 : vector<8x288xf32>
    %cst_20 = arith.constant 5.000000e-01 : f32
    %36 = vector.broadcast %cst_20 : f32 to vector<8x288xf32>
    %37 = arith.addf %35, %36 : vector<8x288xf32>
    %cst_21 = arith.constant 1.000000e+00 : f32
    %38 = arith.subf %cst_21, %0 : f32
    %39 = vector.broadcast %38 : f32 to vector<8x288xf32>
    %40 = arith.mulf %39, %37 : vector<8x288xf32>
    %41 = vector.broadcast %0 : f32 to vector<8x288xf32>
    %42 = arith.addf %41, %40 : vector<8x288xf32>
    %43 = arith.mulf %10, %42 : vector<8x288xf32>
    %44 = arith.truncf %43 : vector<8x288xf32> to vector<8x288xbf16>
    %c0_22 = arith.constant 0 : index
    %c0_23 = arith.constant 0 : index
    %45 = vector.load %arg6[%c0_22, %c0_23] : memref<288x128xbf16, #tpu.memory_space<vmem>>, vector<288x128xbf16>
    %cst_24 = arith.constant dense<0.000000e+00> : vector<8x128xf32>
    %46 = tpu.matmul %44, %45, %cst_24 {dimension_numbers = #tpu.dot_dimension_numbers<[1], [0], [0], [1], [0, 0, 1, 1], [], []>} : vector<8x288xbf16>, vector<288x128xbf16>, vector<8x128xf32> -> vector<8x128xf32>
    %c0_25 = arith.constant 0 : index
    %c0_26 = arith.constant 0 : index
    %47 = vector.load %arg7[%c0_25, %c0_26] : memref<1x1xf32, #tpu.memory_space<vmem>>, vector<1x1xf32>
    %48 = vector.broadcast %47 : vector<1x1xf32> to vector<8x128xf32>
    %49 = arith.addf %46, %48 : vector<8x128xf32>
    %50 = arith.extf %2 : vector<8x128xbf16> to vector<8x128xf32>
    %51 = arith.mulf %49, %50 : vector<8x128xf32>
    %c0_27 = arith.constant 0 : index
    %c0_28 = arith.constant 0 : index
    %52 = vector.load %arg3[%c0_27, %c0_28] : memref<8x32xbf16, #tpu.memory_space<vmem>>, vector<8x32xbf16>
    %c0_29 = arith.constant 0 : index
    %c0_30 = arith.constant 0 : index
    %53 = vector.load %arg8[%c0_29, %c0_30] : memref<32x200xbf16, #tpu.memory_space<vmem>>, vector<32x200xbf16>
    %cst_31 = arith.constant dense<0.000000e+00> : vector<8x200xf32>
    %54 = tpu.matmul %52, %53, %cst_31 {dimension_numbers = #tpu.dot_dimension_numbers<[1], [0], [0], [1], [0, 0, 1, 1], [], []>} : vector<8x32xbf16>, vector<32x200xbf16>, vector<8x200xf32> -> vector<8x200xf32>
    %55 = arith.truncf %51 : vector<8x128xf32> to vector<8x128xbf16>
    %c0_32 = arith.constant 0 : index
    %c0_33 = arith.constant 0 : index
    %56 = vector.load %arg9[%c0_32, %c0_33] : memref<128x200xbf16, #tpu.memory_space<vmem>>, vector<128x200xbf16>
    %cst_34 = arith.constant dense<0.000000e+00> : vector<8x200xf32>
    %57 = tpu.matmul %55, %56, %cst_34 {dimension_numbers = #tpu.dot_dimension_numbers<[1], [0], [0], [1], [0, 0, 1, 1], [], []>} : vector<8x128xbf16>, vector<128x200xbf16>, vector<8x200xf32> -> vector<8x200xf32>
    %58 = arith.addf %54, %57 : vector<8x200xf32>
    %c0_35 = arith.constant 0 : index
    %c0_36 = arith.constant 0 : index
    %59 = vector.load %arg10[%c0_35, %c0_36] : memref<1x200xf32, #tpu.memory_space<vmem>>, vector<1x200xf32>
    %60 = vector.broadcast %59 : vector<1x200xf32> to vector<8x200xf32>
    %61 = arith.addf %58, %60 : vector<8x200xf32>
    %cst_37 = arith.constant dense<0.000000e+00> : vector<200xf32>
    %62 = vector.multi_reduction <add>, %61, %cst_37 [0] : vector<8x200xf32> to vector<200xf32>
    %63 = vector.shape_cast %62 : vector<200xf32> to vector<1x200xf32>
    %cst_38 = arith.constant 8.000000e+00 : f32
    %64 = vector.broadcast %cst_38 : f32 to vector<1x200xf32>
    %65 = arith.divf %63, %64 : vector<1x200xf32>
    %66 = vector.broadcast %65 : vector<1x200xf32> to vector<8x200xf32>
    %67 = arith.subf %61, %66 : vector<8x200xf32>
    %68 = arith.mulf %67, %67 : vector<8x200xf32>
    %cst_39 = arith.constant dense<0.000000e+00> : vector<200xf32>
    %69 = vector.multi_reduction <add>, %68, %cst_39 [0] : vector<8x200xf32> to vector<200xf32>
    %70 = vector.shape_cast %69 : vector<200xf32> to vector<1x200xf32>
    %cst_40 = arith.constant 8.000000e+00 : f32
    %cst_41 = arith.constant 1.000000e+00 : f32
    %71 = arith.subf %cst_40, %cst_41 : f32
    %cst_42 = arith.constant 1.000000e+00 : f32
    %72 = arith.maximumf %71, %cst_42 : f32
    %73 = vector.broadcast %72 : f32 to vector<1x200xf32>
    %74 = arith.divf %70, %73 : vector<1x200xf32>
    %75 = vector.broadcast %65 : vector<1x200xf32> to vector<8x200xf32>
    %76 = arith.subf %61, %75 : vector<8x200xf32>
    %cst_43 = arith.constant 9.99999971E-10 : f32
    %77 = vector.broadcast %cst_43 : f32 to vector<1x200xf32>
    %78 = arith.addf %74, %77 : vector<1x200xf32>
    %79 = math.rsqrt %78 : vector<1x200xf32>
    %80 = vector.broadcast %79 : vector<1x200xf32> to vector<8x200xf32>
    %81 = arith.mulf %76, %80 : vector<8x200xf32>
    %cst_44 = arith.constant 5.000000e-01 : f32
    %82 = vector.broadcast %cst_44 : f32 to vector<8x200xf32>
    %83 = arith.mulf %82, %81 : vector<8x200xf32>
    %84 = math.tanh %83 : vector<8x200xf32>
    %cst_45 = arith.constant 5.000000e-01 : f32
    %85 = vector.broadcast %cst_45 : f32 to vector<8x200xf32>
    %86 = arith.mulf %85, %84 : vector<8x200xf32>
    %cst_46 = arith.constant 5.000000e-01 : f32
    %87 = vector.broadcast %cst_46 : f32 to vector<8x200xf32>
    %88 = arith.addf %86, %87 : vector<8x200xf32>
    %cst_47 = arith.constant 1.000000e+00 : f32
    %89 = arith.subf %cst_47, %1 : f32
    %90 = vector.broadcast %89 : f32 to vector<8x200xf32>
    %91 = arith.mulf %90, %88 : vector<8x200xf32>
    %92 = vector.broadcast %1 : f32 to vector<8x200xf32>
    %93 = arith.addf %92, %91 : vector<8x200xf32>
    %94 = arith.mulf %61, %93 : vector<8x200xf32>
    %95 = arith.truncf %94 : vector<8x200xf32> to vector<8x200xbf16>
    %c0_48 = arith.constant 0 : index
    %c0_49 = arith.constant 0 : index
    %96 = vector.load %arg11[%c0_48, %c0_49] : memref<200x80xbf16, #tpu.memory_space<vmem>>, vector<200x80xbf16>
    %cst_50 = arith.constant dense<0.000000e+00> : vector<8x80xf32>
    %97 = tpu.matmul %95, %96, %cst_50 {dimension_numbers = #tpu.dot_dimension_numbers<[1], [0], [0], [1], [0, 0, 1, 1], [], []>} : vector<8x200xbf16>, vector<200x80xbf16>, vector<8x80xf32> -> vector<8x80xf32>
    %c0_51 = arith.constant 0 : index
    %c0_52 = arith.constant 0 : index
    %98 = vector.load %arg12[%c0_51, %c0_52] : memref<1x80xf32, #tpu.memory_space<vmem>>, vector<1x80xf32>
    %99 = vector.broadcast %98 : vector<1x80xf32> to vector<8x80xf32>
    %100 = arith.addf %97, %99 : vector<8x80xf32>
    %cst_53 = arith.constant dense<0.000000e+00> : vector<80xf32>
    %101 = vector.multi_reduction <add>, %100, %cst_53 [0] : vector<8x80xf32> to vector<80xf32>
    %102 = vector.shape_cast %101 : vector<80xf32> to vector<1x80xf32>
    %cst_54 = arith.constant 8.000000e+00 : f32
    %103 = vector.broadcast %cst_54 : f32 to vector<1x80xf32>
    %104 = arith.divf %102, %103 : vector<1x80xf32>
    %105 = vector.broadcast %104 : vector<1x80xf32> to vector<8x80xf32>
    %106 = arith.subf %100, %105 : vector<8x80xf32>
    %107 = arith.mulf %106, %106 : vector<8x80xf32>
    %cst_55 = arith.constant dense<0.000000e+00> : vector<80xf32>
    %108 = vector.multi_reduction <add>, %107, %cst_55 [0] : vector<8x80xf32> to vector<80xf32>
    %109 = vector.shape_cast %108 : vector<80xf32> to vector<1x80xf32>
    %cst_56 = arith.constant 8.000000e+00 : f32
    %cst_57 = arith.constant 1.000000e+00 : f32
    %110 = arith.subf %cst_56, %cst_57 : f32
    %cst_58 = arith.constant 1.000000e+00 : f32
    %111 = arith.maximumf %110, %cst_58 : f32
    %112 = vector.broadcast %111 : f32 to vector<1x80xf32>
    %113 = arith.divf %109, %112 : vector<1x80xf32>
    %114 = vector.broadcast %104 : vector<1x80xf32> to vector<8x80xf32>
    %115 = arith.subf %100, %114 : vector<8x80xf32>
    %cst_59 = arith.constant 9.99999971E-10 : f32
    %116 = vector.broadcast %cst_59 : f32 to vector<1x80xf32>
    %117 = arith.addf %113, %116 : vector<1x80xf32>
    %118 = math.rsqrt %117 : vector<1x80xf32>
    %119 = vector.broadcast %118 : vector<1x80xf32> to vector<8x80xf32>
    %120 = arith.mulf %115, %119 : vector<8x80xf32>
    %cst_60 = arith.constant 5.000000e-01 : f32
    %121 = vector.broadcast %cst_60 : f32 to vector<8x80xf32>
    %122 = arith.mulf %121, %120 : vector<8x80xf32>
    %123 = math.tanh %122 : vector<8x80xf32>
    %cst_61 = arith.constant 5.000000e-01 : f32
    %124 = vector.broadcast %cst_61 : f32 to vector<8x80xf32>
    %125 = arith.mulf %124, %123 : vector<8x80xf32>
    %cst_62 = arith.constant 5.000000e-01 : f32
    %126 = vector.broadcast %cst_62 : f32 to vector<8x80xf32>
    %127 = arith.addf %125, %126 : vector<8x80xf32>
    %cst_63 = arith.constant 1.000000e+00 : f32
    %128 = arith.subf %cst_63, %1 : f32
    %129 = vector.broadcast %128 : f32 to vector<8x80xf32>
    %130 = arith.mulf %129, %127 : vector<8x80xf32>
    %131 = vector.broadcast %1 : f32 to vector<8x80xf32>
    %132 = arith.addf %131, %130 : vector<8x80xf32>
    %133 = arith.mulf %100, %132 : vector<8x80xf32>
    %c0_64 = arith.constant 0 : index
    %c0_65 = arith.constant 0 : index
    %134 = vector.load %arg13[%c0_64, %c0_65] : memref<1x80xf32, #tpu.memory_space<vmem>>, vector<1x80xf32>
    %135 = vector.broadcast %134 : vector<1x80xf32> to vector<8x80xf32>
    %136 = arith.mulf %133, %135 : vector<8x80xf32>
    %cst_66 = arith.constant dense<0.000000e+00> : vector<8xf32>
    %137 = vector.multi_reduction <add>, %136, %cst_66 [1] : vector<8x80xf32> to vector<8xf32>
    %138 = vector.shape_cast %137 : vector<8xf32> to vector<8x1xf32>
    %c0_67 = arith.constant 0 : index
    %c0_68 = arith.constant 0 : index
    %139 = vector.load %arg14[%c0_67, %c0_68] : memref<1x1xf32, #tpu.memory_space<vmem>>, vector<1x1xf32>
    %140 = vector.broadcast %139 : vector<1x1xf32> to vector<8x1xf32>
    %141 = arith.addf %138, %140 : vector<8x1xf32>
    %cst_69 = arith.constant 5.000000e-01 : f32
    %142 = vector.broadcast %cst_69 : f32 to vector<8x1xf32>
    %143 = arith.mulf %142, %141 : vector<8x1xf32>
    %144 = math.tanh %143 : vector<8x1xf32>
    %cst_70 = arith.constant 5.000000e-01 : f32
    %145 = vector.broadcast %cst_70 : f32 to vector<8x1xf32>
    %146 = arith.mulf %145, %144 : vector<8x1xf32>
    %cst_71 = arith.constant 5.000000e-01 : f32
    %147 = vector.broadcast %cst_71 : f32 to vector<8x1xf32>
    %148 = arith.addf %146, %147 : vector<8x1xf32>
    %c0_72 = arith.constant 0 : index
    %c0_73 = arith.constant 0 : index
    %149 = vector.load %arg17[%c0_72, %c0_73] : memref<8x1xf32, #tpu.memory_space<vmem>>, vector<8x1xf32>
    tpu.vector_store %arg17[%c0_72, %c0_73], %148 {strides = array<i32>} : memref<8x1xf32, #tpu.memory_space<vmem>>, vector<8x1xf32>,
    return
  }
  func.func @transform_0(%arg0: i32) -> (i32, i32) {
    %c0_i32 = arith.constant 0 : i32
    %c0_i32_0 = arith.constant 0 : i32
    return %arg0, %c0_i32 : i32, i32
  }
  func.func @transform_1(%arg0: i32) -> (i32, i32) {
    %c0_i32 = arith.constant 0 : i32
    %c0_i32_0 = arith.constant 0 : i32
    return %arg0, %c0_i32 : i32, i32
  }
  func.func @transform_2(%arg0: i32) -> (i32, i32) {
    %c0_i32 = arith.constant 0 : i32
    %c0_i32_0 = arith.constant 0 : i32
    return %arg0, %c0_i32 : i32, i32
  }
  func.func @transform_3(%arg0: i32) -> (i32, i32) {
    %c0_i32 = arith.constant 0 : i32
    %c0_i32_0 = arith.constant 0 : i32
    %c0_i32_1 = arith.constant 0 : i32
    return %c0_i32, %c0_i32_0 : i32, i32
  }
  func.func @transform_4(%arg0: i32) -> (i32, i32) {
    %c0_i32 = arith.constant 0 : i32
    %c0_i32_0 = arith.constant 0 : i32
    %c0_i32_1 = arith.constant 0 : i32
    return %c0_i32, %c0_i32_0 : i32, i32
  }
  func.func @transform_5(%arg0: i32) -> (i32, i32) {
    %c0_i32 = arith.constant 0 : i32
    %c0_i32_0 = arith.constant 0 : i32
    %c0_i32_1 = arith.constant 0 : i32
    return %c0_i32, %c0_i32_0 : i32, i32
  }
  func.func @transform_6(%arg0: i32) -> (i32, i32) {
    %c0_i32 = arith.constant 0 : i32
    %c0_i32_0 = arith.constant 0 : i32
    %c0_i32_1 = arith.constant 0 : i32
    return %c0_i32, %c0_i32_0 : i32, i32
  }
  func.func @transform_7(%arg0: i32) -> (i32, i32) {
    %c0_i32 = arith.constant 0 : i32
    %c0_i32_0 = arith.constant 0 : i32
    %c0_i32_1 = arith.constant 0 : i32
    return %c0_i32, %c0_i32_0 : i32, i32
  }
  func.func @transform_8(%arg0: i32) -> (i32, i32) {
    %c0_i32 = arith.constant 0 : i32
    %c0_i32_0 = arith.constant 0 : i32
    %c0_i32_1 = arith.constant 0 : i32
    return %c0_i32, %c0_i32_0 : i32, i32
  }
  func.func @transform_9(%arg0: i32) -> (i32, i32) {
    %c0_i32 = arith.constant 0 : i32
    %c0_i32_0 = arith.constant 0 : i32
    %c0_i32_1 = arith.constant 0 : i32
    return %c0_i32, %c0_i32_0 : i32, i32
  }
  func.func @transform_10(%arg0: i32) -> (i32, i32) {
    %c0_i32 = arith.constant 0 : i32
    %c0_i32_0 = arith.constant 0 : i32
    %c0_i32_1 = arith.constant 0 : i32
    return %c0_i32, %c0_i32_0 : i32, i32
  }
  func.func @transform_11(%arg0: i32) -> (i32, i32) {
    %c0_i32 = arith.constant 0 : i32
    %c0_i32_0 = arith.constant 0 : i32
    %c0_i32_1 = arith.constant 0 : i32
    return %c0_i32, %c0_i32_0 : i32, i32
  }
  func.func @transform_12(%arg0: i32) -> (i32, i32) {
    %c0_i32 = arith.constant 0 : i32
    %c0_i32_0 = arith.constant 0 : i32
    %c0_i32_1 = arith.constant 0 : i32
    return %c0_i32, %c0_i32_0 : i32, i32
  }
  func.func @transform_13(%arg0: i32) -> (i32, i32) {
    %c0_i32 = arith.constant 0 : i32
    %c0_i32_0 = arith.constant 0 : i32
    %c0_i32_1 = arith.constant 0 : i32
    return %c0_i32, %c0_i32_0 : i32, i32
  }
  func.func @transform_14(%arg0: i32) -> (i32, i32) {
    %c0_i32 = arith.constant 0 : i32
    %c0_i32_0 = arith.constant 0 : i32
    %c0_i32_1 = arith.constant 0 : i32
    return %c0_i32, %c0_i32_0 : i32, i32
  }
  func.func @transform_15(%arg0: i32) -> (i32, i32) {
    %c0_i32 = arith.constant 0 : i32
    %c0_i32_0 = arith.constant 0 : i32
    %c0_i32_1 = arith.constant 0 : i32
    return %c0_i32, %c0_i32_0 : i32, i32
  }
  func.func @transform_16(%arg0: i32) -> (i32, i32) {
    %c0_i32 = arith.constant 0 : i32
    %c0_i32_0 = arith.constant 0 : i32
    return %arg0, %c0_i32 : i32, i32
  }
}

</mosaic_0001>

<llo_original>
// kernel: tpu_custom_call.1
$region0: #{tpu_custom_call.1}
  #allocation0 [shape = 'u32[]', space=smem, size = 0x4, offset = 0x4, fixed_abs, tag = 'smem constant byte address 0x4 - core index']
  #allocation1 [shape = 'u32[72,128]{1,0:T(1,128)}', space=vmem, size = 0x9000, scoped, tag = 'internal scratch']
  #allocation2 [shape = 'f32[1,1]{1,0:T(1,128)S(1)}', space=vmem, size = 0x200, scoped, tag = 'scoped memory for tpu_custom_call.1']
  #allocation3 [shape = 'f32[1,1]{1,0:T(1,128)S(1)}', space=vmem, size = 0x200, scoped, tag = 'scoped memory for tpu_custom_call.1']
  #allocation4 [shape = 'f32[1,1]{1,0:T(1,128)S(6)}', space=smem, size = 0x200, scoped, tag = 'scoped memory for tpu_custom_call.1']
  #allocation5 [shape = 'f32[1,1]{1,0:T(1,128)S(6)}', space=smem, size = 0x200, scoped, tag = 'scoped memory for tpu_custom_call.1']
  %s0 = inlined_call_operand.vmem [shape: bf16[8,128], index: 0, kind: input, shape index: {}]
  %s1 = inlined_call_operand.vmem [shape: bf16[8,128], index: 1, kind: input, shape index: {}]
  %s2 = inlined_call_operand.vmem [shape: bf16[8,32], index: 2, kind: input, shape index: {}]
  %s3 = inlined_call_operand.vmem [shape: bf16[384,288], index: 3, kind: input, shape index: {}]
  %s4 = inlined_call_operand.vmem [shape: f32[1,288], index: 4, kind: input, shape index: {}]
  %s5 = inlined_call_operand.vmem [shape: bf16[288,128], index: 5, kind: input, shape index: {}]
  %s6 = inlined_call_operand.<no memory space> [shape: f32[1,1], index: 6, kind: input, shape index: {}]
  %s7 = inlined_call_operand.vmem [shape: bf16[32,200], index: 7, kind: input, shape index: {}]
  %s8 = inlined_call_operand.vmem [shape: bf16[128,200], index: 8, kind: input, shape index: {}]
  %s9 = inlined_call_operand.vmem [shape: f32[1,200], index: 9, kind: input, shape index: {}]
  %s10 = inlined_call_operand.vmem [shape: bf16[200,80], index: 10, kind: input, shape index: {}]
  %s11 = inlined_call_operand.vmem [shape: f32[1,80], index: 11, kind: input, shape index: {}]
  %s12 = inlined_call_operand.vmem [shape: f32[1,80], index: 12, kind: input, shape index: {}]
  %s13 = inlined_call_operand.<no memory space> [shape: f32[1,1], index: 13, kind: input, shape index: {}]
  %s14 = inlined_call_operand.<no memory space> [shape: f32[1,1], index: 14, kind: input, shape index: {}]
  %s15 = inlined_call_operand.<no memory space> [shape: f32[1,1], index: 15, kind: input, shape index: {}]
  %s16 = inlined_call_operand.vmem [shape: f32[8,1], index: 16, kind: output, shape index: {}]
  %s17 = sld [smem:[#allocation0]]
  $region74: #{tpu_custom_call.1} parent=0
    _
  %s19 = ssub.s32 1, %s17
  %s20 = scalar_select 0, %s19, %s17
  %v21 = vstv %s6
  %22 = vst [vmem:[#allocation2] sm:$0x1] %v21
  %v23 = vstv %s13
  %24 = vst [vmem:[#allocation3] sm:$0x1] %v23
  %25 = sst [smem:[#allocation4]] %s14
  %26 = sst [smem:[#allocation5]] %s15
  // Predicated region
  $region2: #{tpu_custom_call.1} parent=0 // pred_check
    _
  $region3: #{tpu_custom_call.1} parent=0 // pred_check_branch
    %28 = sbr.rel (0) target = $region5
  $region4: #{tpu_custom_call.1} parent=0 // pred_region
    _
  $region5: #{tpu_custom_call.1} parent=0 // pred_fallthru
    _
  // Predicated region
  $region6: #{tpu_custom_call.1} parent=0 // pred_check
    _
  $region7: #{tpu_custom_call.1} parent=0 // pred_check_branch
    %30 = sbr.rel (0) target = $region9
  $region8: #{tpu_custom_call.1} parent=0 // pred_region
    _
  $region9: #{tpu_custom_call.1} parent=0 // pred_fallthru
    _
  // Predicated region
  $region10: #{tpu_custom_call.1} parent=0 // pred_check
    _
  $region11: #{tpu_custom_call.1} parent=0 // pred_check_branch
    %32 = sbr.rel (0) target = $region13
  $region12: #{tpu_custom_call.1} parent=0 // pred_region
    _
  $region13: #{tpu_custom_call.1} parent=0 // pred_fallthru
    _
  // Predicated region
  $region14: #{tpu_custom_call.1} parent=0 // pred_check
    _
  $region15: #{tpu_custom_call.1} parent=0 // pred_check_branch
    %34 = sbr.rel (0) target = $region17
  $region16: #{tpu_custom_call.1} parent=0 // pred_region
    _
  $region17: #{tpu_custom_call.1} parent=0 // pred_fallthru
    _
  // Predicated region
  $region18: #{tpu_custom_call.1} parent=0 // pred_check
    _
  $region19: #{tpu_custom_call.1} parent=0 // pred_check_branch
    %36 = sbr.rel (0) target = $region21
  $region20: #{tpu_custom_call.1} parent=0 // pred_region
    _
  $region21: #{tpu_custom_call.1} parent=0 // pred_fallthru
    _
  // Predicated region
  $region22: #{tpu_custom_call.1} parent=0 // pred_check
    _
  $region23: #{tpu_custom_call.1} parent=0 // pred_check_branch
    %38 = sbr.rel (0) target = $region25
  $region24: #{tpu_custom_call.1} parent=0 // pred_region
    _
  $region25: #{tpu_custom_call.1} parent=0 // pred_fallthru
    _
  // Predicated region
  $region26: #{tpu_custom_call.1} parent=0 // pred_check
    _
  $region27: #{tpu_custom_call.1} parent=0 // pred_check_branch
    %40 = sbr.rel (0) target = $region29
  $region28: #{tpu_custom_call.1} parent=0 // pred_region
    _
  $region29: #{tpu_custom_call.1} parent=0 // pred_fallthru
    _
  // Predicated region
  $region30: #{tpu_custom_call.1} parent=0 // pred_check
    _
  $region31: #{tpu_custom_call.1} parent=0 // pred_check_branch
    %42 = sbr.rel (0) target = $region33
  $region32: #{tpu_custom_call.1} parent=0 // pred_region
    _
  $region33: #{tpu_custom_call.1} parent=0 // pred_fallthru
    _
  // Predicated region
  $region34: #{tpu_custom_call.1} parent=0 // pred_check
    _
  $region35: #{tpu_custom_call.1} parent=0 // pred_check_branch
    %44 = sbr.rel (0) target = $region37
  $region36: #{tpu_custom_call.1} parent=0 // pred_region
    _
  $region37: #{tpu_custom_call.1} parent=0 // pred_fallthru
    _
  // Predicated region
  $region38: #{tpu_custom_call.1} parent=0 // pred_check
    _
  $region39: #{tpu_custom_call.1} parent=0 // pred_check_branch
    %46 = sbr.rel (0) target = $region41
  $region40: #{tpu_custom_call.1} parent=0 // pred_region
    _
  $region41: #{tpu_custom_call.1} parent=0 // pred_fallthru
    _
  // Predicated region
  $region42: #{tpu_custom_call.1} parent=0 // pred_check
    _
  $region43: #{tpu_custom_call.1} parent=0 // pred_check_branch
    %48 = sbr.rel (0) target = $region45
  $region44: #{tpu_custom_call.1} parent=0 // pred_region
    _
  $region45: #{tpu_custom_call.1} parent=0 // pred_fallthru
    _
  // Predicated region
  $region46: #{tpu_custom_call.1} parent=0 // pred_check
    _
  $region47: #{tpu_custom_call.1} parent=0 // pred_check_branch
    %50 = sbr.rel (0) target = $region49
  $region48: #{tpu_custom_call.1} parent=0 // pred_region
    _
  $region49: #{tpu_custom_call.1} parent=0 // pred_fallthru
    _
  // Predicated region
  $region50: #{tpu_custom_call.1} parent=0 // pred_check
    _
  $region51: #{tpu_custom_call.1} parent=0 // pred_check_branch
    %52 = sbr.rel (0) target = $region53
  $region52: #{tpu_custom_call.1} parent=0 // pred_region
    _
  $region53: #{tpu_custom_call.1} parent=0 // pred_fallthru
    _
  // Predicated region
  $region54: #{tpu_custom_call.1} parent=0 // pred_check
    _
  $region55: #{tpu_custom_call.1} parent=0 // pred_check_branch
    %54 = sbr.rel (0) target = $region57
  $region56: #{tpu_custom_call.1} parent=0 // pred_region
    _
  $region57: #{tpu_custom_call.1} parent=0 // pred_fallthru
    _
  // Predicated region
  $region58: #{tpu_custom_call.1} parent=0 // pred_check
    _
  $region59: #{tpu_custom_call.1} parent=0 // pred_check_branch
    %56 = sbr.rel (0) target = $region61
  $region60: #{tpu_custom_call.1} parent=0 // pred_region
    _
  $region61: #{tpu_custom_call.1} parent=0 // pred_fallthru
    _
  // Predicated region
  $region62: #{tpu_custom_call.1} parent=0 // pred_check
    _
  $region63: #{tpu_custom_call.1} parent=0 // pred_check_branch
    %58 = sbr.rel (0) target = $region65
  $region64: #{tpu_custom_call.1} parent=0 // pred_region
    _
  $region65: #{tpu_custom_call.1} parent=0 // pred_fallthru
    _
  %s60 = sld [smem:[#allocation4]]
  %s61 = sld [smem:[#allocation5]]
  %v62 = vld [vmem:[%s0] sm:$0xf]
  %v63 = vld [vmem:[%s1] sm:$0xf]
  %v64 = vunpack.c.l.bf16 %v62
  %v65 = vunpack.c.l.bf16 %v63
  %v66 = vmul.f32 %v64, %v65
  %v67 = vpack.c.bf16 %v66, %v66
  %v68 = vld [vmem:[%s3] sm:$0xff]
  %v69 = vld [vmem:[%s3 + $0x8] sm:$0xf]
  %v70 = vld [vmem:[%s3 + $0xc] sm:$0xff]
  %v71 = vld [vmem:[%s3 + $0x14] sm:$0xf]
  %v72 = vld [vmem:[%s3 + $0x18] sm:$0xff]
  %v73 = vld [vmem:[%s3 + $0x20] sm:$0xf]
  %v74 = vld [vmem:[%s3 + $0x24] sm:$0xff]
  %v75 = vld [vmem:[%s3 + $0x2c] sm:$0xf]
  %v76 = vld [vmem:[%s3 + $0x30] sm:$0xff]
  %v77 = vld [vmem:[%s3 + $0x38] sm:$0xf]
  %v78 = vld [vmem:[%s3 + $0x3c] sm:$0xff]
  %v79 = vld [vmem:[%s3 + $0x44] sm:$0xf]
  %v80 = vld [vmem:[%s3 + $0x48] sm:$0xff]
  %v81 = vld [vmem:[%s3 + $0x50] sm:$0xf]
  %v82 = vld [vmem:[%s3 + $0x54] sm:$0xff]
  %v83 = vld [vmem:[%s3 + $0x5c] sm:$0xf]
  %v84 = vld [vmem:[%s3 + $0x60] sm:$0xff]
  %v85 = vld [vmem:[%s3 + $0x68] sm:$0xf]
  %v86 = vld [vmem:[%s3 + $0x6c] sm:$0xff]
  %v87 = vld [vmem:[%s3 + $0x74] sm:$0xf]
  %v88 = vld [vmem:[%s3 + $0x78] sm:$0xff]
  %v89 = vld [vmem:[%s3 + $0x80] sm:$0xf]
  %v90 = vld [vmem:[%s3 + $0x84] sm:$0xff]
  %v91 = vld [vmem:[%s3 + $0x8c] sm:$0xf]
  %v92 = vld [vmem:[%s3 + $0x90] sm:$0xff]
  %v93 = vld [vmem:[%s3 + $0x98] sm:$0xf]
  %v94 = vld [vmem:[%s3 + $0x9c] sm:$0xff]
  %v95 = vld [vmem:[%s3 + $0xa4] sm:$0xf]
  %v96 = vld [vmem:[%s3 + $0xa8] sm:$0xff]
  %v97 = vld [vmem:[%s3 + $0xb0] sm:$0xf]
  %v98 = vld [vmem:[%s3 + $0xb4] sm:$0xff]
  %v99 = vld [vmem:[%s3 + $0xbc] sm:$0xf]
  %v100 = vld [vmem:[%s3 + $0xc0] sm:$0xff]
  %v101 = vld [vmem:[%s3 + $0xc8] sm:$0xf]
  %v102 = vld [vmem:[%s3 + $0xcc] sm:$0xff]
  %v103 = vld [vmem:[%s3 + $0xd4] sm:$0xf]
  %v104 = vld [vmem:[%s3 + $0xd8] sm:$0xff]
  %v105 = vld [vmem:[%s3 + $0xe0] sm:$0xf]
  %v106 = vld [vmem:[%s3 + $0xe4] sm:$0xff]
  %v107 = vld [vmem:[%s3 + $0xec] sm:$0xf]
  %v108 = vld [vmem:[%s3 + $0xf0] sm:$0xff]
  %v109 = vld [vmem:[%s3 + $0xf8] sm:$0xf]
  %v110 = vld [vmem:[%s3 + $0xfc] sm:$0xff]
  %v111 = vld [vmem:[%s3 + $0x104] sm:$0xf]
  %v112 = vld [vmem:[%s3 + $0x108] sm:$0xff]
  %v113 = vld [vmem:[%s3 + $0x110] sm:$0xf]
  %v114 = vld [vmem:[%s3 + $0x114] sm:$0xff]
  %v115 = vld [vmem:[%s3 + $0x11c] sm:$0xf]
  %v116 = vld [vmem:[%s3 + $0x120] sm:$0xff]
  %v117 = vld [vmem:[%s3 + $0x128] sm:$0xf]
  %v118 = vld [vmem:[%s3 + $0x12c] sm:$0xff]
  %v119 = vld [vmem:[%s3 + $0x134] sm:$0xf]
  %v120 = vld [vmem:[%s3 + $0x138] sm:$0xff]
  %v121 = vld [vmem:[%s3 + $0x140] sm:$0xf]
  %v122 = vld [vmem:[%s3 + $0x144] sm:$0xff]
  %v123 = vld [vmem:[%s3 + $0x14c] sm:$0xf]
  %v124 = vld [vmem:[%s3 + $0x150] sm:$0xff]
  %v125 = vld [vmem:[%s3 + $0x158] sm:$0xf]
  %v126 = vld [vmem:[%s3 + $0x15c] sm:$0xff]
  %v127 = vld [vmem:[%s3 + $0x164] sm:$0xf]
  %v128 = vld [vmem:[%s3 + $0x168] sm:$0xff]
  %v129 = vld [vmem:[%s3 + $0x170] sm:$0xf]
  %v130 = vld [vmem:[%s3 + $0x174] sm:$0xff]
  %v131 = vld [vmem:[%s3 + $0x17c] sm:$0xf]
  %v132 = vld [vmem:[%s3 + $0x180] sm:$0xff]
  %v133 = vld [vmem:[%s3 + $0x188] sm:$0xf]
  %v134 = vld [vmem:[%s3 + $0x18c] sm:$0xff]
  %v135 = vld [vmem:[%s3 + $0x194] sm:$0xf]
  %v136 = vld [vmem:[%s3 + $0x198] sm:$0xff]
  %v137 = vld [vmem:[%s3 + $0x1a0] sm:$0xf]
  %v138 = vld [vmem:[%s3 + $0x1a4] sm:$0xff]
  %v139 = vld [vmem:[%s3 + $0x1ac] sm:$0xf]
  %v140 = vld [vmem:[%s3 + $0x1b0] sm:$0xff]
  %v141 = vld [vmem:[%s3 + $0x1b8] sm:$0xf]
  %v142 = vld [vmem:[%s3 + $0x1bc] sm:$0xff]
  %v143 = vld [vmem:[%s3 + $0x1c4] sm:$0xf]
  %v144 = vld [vmem:[%s3 + $0x1c8] sm:$0xff]
  %v145 = vld [vmem:[%s3 + $0x1d0] sm:$0xf]
  %v146 = vld [vmem:[%s3 + $0x1d4] sm:$0xff]
  %v147 = vld [vmem:[%s3 + $0x1dc] sm:$0xf]
  %v148 = vld [vmem:[%s3 + $0x1e0] sm:$0xff]
  %v149 = vld [vmem:[%s3 + $0x1e8] sm:$0xf]
  %v150 = vld [vmem:[%s3 + $0x1ec] sm:$0xff]
  %v151 = vld [vmem:[%s3 + $0x1f4] sm:$0xf]
  %v152 = vld [vmem:[%s3 + $0x1f8] sm:$0xff]
  %v153 = vld [vmem:[%s3 + $0x200] sm:$0xf]
  %v154 = vld [vmem:[%s3 + $0x204] sm:$0xff]
  %v155 = vld [vmem:[%s3 + $0x20c] sm:$0xf]
  %v156 = vld [vmem:[%s3 + $0x210] sm:$0xff]
  %v157 = vld [vmem:[%s3 + $0x218] sm:$0xf]
  %v158 = vld [vmem:[%s3 + $0x21c] sm:$0xff]
  %v159 = vld [vmem:[%s3 + $0x224] sm:$0xf]
  %v160 = vld [vmem:[%s3 + $0x228] sm:$0xff]
  %v161 = vld [vmem:[%s3 + $0x230] sm:$0xf]
  %v162 = vld [vmem:[%s3 + $0x234] sm:$0xff]
  %v163 = vld [vmem:[%s3 + $0x23c] sm:$0xf]
  %v164 = vld [vmem:[%s4] sm:$0x7]
  %v166 = vperm.slane %v164, 0
  %v167 = vperm.slane %v164, 1
  %v168 = vperm.slane %v164, 2
  %v268 = vunpack.c.l.b16 %v68
  %v269 = vunpack.c.h.b16 %v68
  %v270 = vunpack.c.l.b16 %v69
  %v271 = vunpack.c.l.b16 %v70
  %v272 = vunpack.c.h.b16 %v70
  %v273 = vunpack.c.l.b16 %v71
  %v274 = vunpack.c.l.b16 %v72
  %v275 = vunpack.c.h.b16 %v72
  %v276 = vunpack.c.l.b16 %v73
  %v277 = vunpack.c.l.b16 %v74
  %v278 = vunpack.c.h.b16 %v74
  %v279 = vunpack.c.l.b16 %v75
  %v280 = vunpack.c.l.b16 %v76
  %v281 = vunpack.c.h.b16 %v76
  %v282 = vunpack.c.l.b16 %v77
  %v283 = vunpack.c.l.b16 %v78
  %v284 = vunpack.c.h.b16 %v78
  %v285 = vunpack.c.l.b16 %v79
  %v286 = vunpack.c.l.b16 %v80
  %v287 = vunpack.c.h.b16 %v80
  %v288 = vunpack.c.l.b16 %v81
  %v289 = vunpack.c.l.b16 %v82
  %v290 = vunpack.c.h.b16 %v82
  %v291 = vunpack.c.l.b16 %v83
  %v292 = vunpack.c.l.b16 %v84
  %v293 = vunpack.c.h.b16 %v84
  %v294 = vunpack.c.l.b16 %v85
  %v295 = vunpack.c.l.b16 %v86
  %v296 = vunpack.c.h.b16 %v86
  %v297 = vunpack.c.l.b16 %v87
  %v298 = vunpack.c.l.b16 %v88
  %v299 = vunpack.c.h.b16 %v88
  %v300 = vunpack.c.l.b16 %v89
  %v301 = vunpack.c.l.b16 %v90
  %v302 = vunpack.c.h.b16 %v90
  %v303 = vunpack.c.l.b16 %v91
  %v304 = vunpack.c.l.b16 %v92
  %v305 = vunpack.c.h.b16 %v92
  %v306 = vunpack.c.l.b16 %v93
  %v307 = vunpack.c.l.b16 %v94
  %v308 = vunpack.c.h.b16 %v94
  %v309 = vunpack.c.l.b16 %v95
  %v310 = vunpack.c.l.b16 %v96
  %v311 = vunpack.c.h.b16 %v96
  %v312 = vunpack.c.l.b16 %v97
  %v313 = vunpack.c.l.b16 %v98
  %v314 = vunpack.c.h.b16 %v98
  %v315 = vunpack.c.l.b16 %v99
  %v316 = vunpack.c.l.b16 %v100
  %v317 = vunpack.c.h.b16 %v100
  %v318 = vunpack.c.l.b16 %v101
  %v319 = vunpack.c.l.b16 %v102
  %v320 = vunpack.c.h.b16 %v102
  %v321 = vunpack.c.l.b16 %v103
  %v322 = vunpack.c.l.b16 %v104
  %v323 = vunpack.c.h.b16 %v104
  %v324 = vunpack.c.l.b16 %v105
  %v325 = vunpack.c.l.b16 %v106
  %v326 = vunpack.c.h.b16 %v106
  %v327 = vunpack.c.l.b16 %v107
  %v328 = vunpack.c.l.b16 %v108
  %v329 = vunpack.c.h.b16 %v108
  %v330 = vunpack.c.l.b16 %v109
  %v331 = vunpack.c.l.b16 %v110
  %v332 = vunpack.c.h.b16 %v110
  %v333 = vunpack.c.l.b16 %v111
  %v334 = vunpack.c.l.b16 %v112
  %v335 = vunpack.c.h.b16 %v112
  %v336 = vunpack.c.l.b16 %v113
  %v337 = vunpack.c.l.b16 %v114
  %v338 = vunpack.c.h.b16 %v114
  %v339 = vunpack.c.l.b16 %v115
  %v340 = vunpack.c.l.b16 %v116
  %v341 = vunpack.c.h.b16 %v116
  %v342 = vunpack.c.l.b16 %v117
  %v343 = vunpack.c.l.b16 %v118
  %v344 = vunpack.c.h.b16 %v118
  %v345 = vunpack.c.l.b16 %v119
  %v346 = vunpack.c.l.b16 %v120
  %v347 = vunpack.c.h.b16 %v120
  %v348 = vunpack.c.l.b16 %v121
  %v349 = vunpack.c.l.b16 %v122
  %v350 = vunpack.c.h.b16 %v122
  %v351 = vunpack.c.l.b16 %v123
  %v352 = vunpack.c.l.b16 %v124
  %v353 = vunpack.c.h.b16 %v124
  %v354 = vunpack.c.l.b16 %v125
  %v355 = vunpack.c.l.b16 %v126
  %v356 = vunpack.c.h.b16 %v126
  %v357 = vunpack.c.l.b16 %v127
  %v358 = vunpack.c.l.b16 %v128
  %v359 = vunpack.c.h.b16 %v128
  %v360 = vunpack.c.l.b16 %v129
  %v361 = vunpack.c.l.b16 %v130
  %v362 = vunpack.c.h.b16 %v130
  %v363 = vunpack.c.l.b16 %v131
  %v364 = vunpack.c.l.b16 %v132
  %v365 = vunpack.c.h.b16 %v132
  %v366 = vunpack.c.l.b16 %v133
  %v367 = vunpack.c.l.b16 %v134
  %v368 = vunpack.c.h.b16 %v134
  %v369 = vunpack.c.l.b16 %v135
  %v370 = vunpack.c.l.b16 %v136
  %v371 = vunpack.c.h.b16 %v136
  %v372 = vunpack.c.l.b16 %v137
  %v373 = vunpack.c.l.b16 %v138
  %v374 = vunpack.c.h.b16 %v138
  %v375 = vunpack.c.l.b16 %v139
  %v376 = vunpack.c.l.b16 %v140
  %v377 = vunpack.c.h.b16 %v140
  %v378 = vunpack.c.l.b16 %v141
  %v379 = vunpack.c.l.b16 %v142
  %v380 = vunpack.c.h.b16 %v142
  %v381 = vunpack.c.l.b16 %v143
  %v382 = vunpack.c.l.b16 %v144
  %v383 = vunpack.c.h.b16 %v144
  %v384 = vunpack.c.l.b16 %v145
  %v385 = vunpack.c.l.b16 %v146
  %v386 = vunpack.c.h.b16 %v146
  %v387 = vunpack.c.l.b16 %v147
  %v388 = vunpack.c.l.b16 %v148
  %v389 = vunpack.c.h.b16 %v148
  %v390 = vunpack.c.l.b16 %v149
  %v391 = vunpack.c.l.b16 %v150
  %v392 = vunpack.c.h.b16 %v150
  %v393 = vunpack.c.l.b16 %v151
  %v394 = vunpack.c.l.b16 %v152
  %v395 = vunpack.c.h.b16 %v152
  %v396 = vunpack.c.l.b16 %v153
  %v397 = vunpack.c.l.b16 %v154
  %v398 = vunpack.c.h.b16 %v154
  %v399 = vunpack.c.l.b16 %v155
  %v400 = vunpack.c.l.b16 %v156
  %v401 = vunpack.c.h.b16 %v156
  %v402 = vunpack.c.l.b16 %v157
  %v403 = vunpack.c.l.b16 %v158
  %v404 = vunpack.c.h.b16 %v158
  %v405 = vunpack.c.l.b16 %v159
  %v406 = vunpack.c.l.b16 %v160
  %v407 = vunpack.c.h.b16 %v160
  %v408 = vunpack.c.l.b16 %v161
  %v409 = vunpack.c.l.b16 %v162
  %v410 = vunpack.c.h.b16 %v162
  %v411 = vunpack.c.l.b16 %v163
  %v412 = vpack.c.b16 %v271, %v268
  %v413 = vpack.c.b16 %v272, %v269
  %v414 = vpack.c.b16 %v273, %v270
  %v415 = vpack.c.b16 %v277, %v274
  %v416 = vpack.c.b16 %v278, %v275
  %v417 = vpack.c.b16 %v279, %v276
  %v418 = vpack.c.b16 %v283, %v280
  %v419 = vpack.c.b16 %v284, %v281
  %v420 = vpack.c.b16 %v285, %v282
  %v421 = vpack.c.b16 %v289, %v286
  %v422 = vpack.c.b16 %v290, %v287
  %v423 = vpack.c.b16 %v291, %v288
  %v424 = vpack.c.b16 %v295, %v292
  %v425 = vpack.c.b16 %v296, %v293
  %v426 = vpack.c.b16 %v297, %v294
  %v427 = vpack.c.b16 %v301, %v298
  %v428 = vpack.c.b16 %v302, %v299
  %v429 = vpack.c.b16 %v303, %v300
  %v430 = vpack.c.b16 %v307, %v304
  %v431 = vpack.c.b16 %v308, %v305
  %v432 = vpack.c.b16 %v309, %v306
  %v433 = vpack.c.b16 %v313, %v310
  %v434 = vpack.c.b16 %v314, %v311
  %v435 = vpack.c.b16 %v315, %v312
  %v436 = vpack.c.b16 %v319, %v316
  %v437 = vpack.c.b16 %v320, %v317
  %v438 = vpack.c.b16 %v321, %v318
  %v439 = vpack.c.b16 %v325, %v322
  %v440 = vpack.c.b16 %v326, %v323
  %v441 = vpack.c.b16 %v327, %v324
  %v442 = vpack.c.b16 %v331, %v328
  %v443 = vpack.c.b16 %v332, %v329
  %v444 = vpack.c.b16 %v333, %v330
  %v445 = vpack.c.b16 %v337, %v334
  %v446 = vpack.c.b16 %v338, %v335
  %v447 = vpack.c.b16 %v339, %v336
  %v448 = vpack.c.b16 %v343, %v340
  %v449 = vpack.c.b16 %v344, %v341
  %v450 = vpack.c.b16 %v345, %v342
  %v451 = vpack.c.b16 %v349, %v346
  %v452 = vpack.c.b16 %v350, %v347
  %v453 = vpack.c.b16 %v351, %v348
  %v454 = vpack.c.b16 %v355, %v352
  %v455 = vpack.c.b16 %v356, %v353
  %v456 = vpack.c.b16 %v357, %v354
  %v457 = vpack.c.b16 %v361, %v358
  %v458 = vpack.c.b16 %v362, %v359
  %v459 = vpack.c.b16 %v363, %v360
  %v460 = vpack.c.b16 %v367, %v364
  %v461 = vpack.c.b16 %v368, %v365
  %v462 = vpack.c.b16 %v369, %v366
  %v463 = vpack.c.b16 %v373, %v370
  %v464 = vpack.c.b16 %v374, %v371
  %v465 = vpack.c.b16 %v375, %v372
  %v466 = vpack.c.b16 %v379, %v376
  %v467 = vpack.c.b16 %v380, %v377
  %v468 = vpack.c.b16 %v381, %v378
  %v469 = vpack.c.b16 %v385, %v382
  %v470 = vpack.c.b16 %v386, %v383
  %v471 = vpack.c.b16 %v387, %v384
  %v472 = vpack.c.b16 %v391, %v388
  %v473 = vpack.c.b16 %v392, %v389
  %v474 = vpack.c.b16 %v393, %v390
  %v475 = vpack.c.b16 %v397, %v394
  %v476 = vpack.c.b16 %v398, %v395
  %v477 = vpack.c.b16 %v399, %v396
  %v478 = vpack.c.b16 %v403, %v400
  %v479 = vpack.c.b16 %v404, %v401
  %v480 = vpack.c.b16 %v405, %v402
  %v481 = vpack.c.b16 %v409, %v406
  %v482 = vpack.c.b16 %v410, %v407
  %v483 = vpack.c.b16 %v411, %v408
  %556 = vmatpush.bf16.msra.mxu0 %v433
  %557 = vmatpush.bf16.msra.mxu0 %v430
  %558 = vmatpush.bf16.msra.mxu0 %v427
  %559 = vmatpush.bf16.msra.mxu0 %v424
  %560 = vmatpush.bf16.msra.mxu0 %v421
  %561 = vmatpush.bf16.msra.mxu0 %v418
  %562 = vmatpush.bf16.msra.mxu0 %v415
  %563 = vmatpush.bf16.msra.mxu0 %v412
  %564 = vmatmul.bf16.gmra.mxu0 %v62
  %v565 = vpop.f32.mrf.mxu0
  %v566 = vadd.f32 %v166, %v565
  %v567 = vpop.f32.mrf.mxu0
  %568 = vdwg.mxu0
  %569 = vmatpush.bf16.msra.mxu0 %v457
  %570 = vmatpush.bf16.msra.mxu0 %v454
  %571 = vmatpush.bf16.msra.mxu0 %v451
  %572 = vmatpush.bf16.msra.mxu0 %v448
  %573 = vmatpush.bf16.msra.mxu0 %v445
  %574 = vmatpush.bf16.msra.mxu0 %v442
  %575 = vmatpush.bf16.msra.mxu0 %v439
  %576 = vmatpush.bf16.msra.mxu0 %v436
  %577 = vmatmul.bf16.gmra.mxu0 %v67
  %v578 = vpop.f32.mrf.mxu0
  %v579 = vadd.f32 %v566, %v578
  %v580 = vpop.f32.mrf.mxu0
  %581 = vdwg.mxu0
  %582 = vmatpush.bf16.msra.mxu0 %v481
  %583 = vmatpush.bf16.msra.mxu0 %v478
  %584 = vmatpush.bf16.msra.mxu0 %v475
  %585 = vmatpush.bf16.msra.mxu0 %v472
  %586 = vmatpush.bf16.msra.mxu0 %v469
  %587 = vmatpush.bf16.msra.mxu0 %v466
  %588 = vmatpush.bf16.msra.mxu0 %v463
  %589 = vmatpush.bf16.msra.mxu0 %v460
  %590 = vmatmul.bf16.gmra.mxu0 %v63
  %v591 = vpop.f32.mrf.mxu0
  %v592 = vadd.f32 %v579, %v591
  %v593 = vpop.f32.mrf.mxu0
  %594 = vdwg.mxu0
  %595 = vmatpush.bf16.msra.mxu0 %v434
  %596 = vmatpush.bf16.msra.mxu0 %v431
  %597 = vmatpush.bf16.msra.mxu0 %v428
  %598 = vmatpush.bf16.msra.mxu0 %v425
  %599 = vmatpush.bf16.msra.mxu0 %v422
  %600 = vmatpush.bf16.msra.mxu0 %v419
  %601 = vmatpush.bf16.msra.mxu0 %v416
  %602 = vmatpush.bf16.msra.mxu0 %v413
  %603 = vmatmul.bf16.gmra.mxu0 %v62
  %v604 = vpop.f32.mrf.mxu0
  %v605 = vadd.f32 %v167, %v604
  %v606 = vpop.f32.mrf.mxu0
  %607 = vdwg.mxu0
  %608 = vmatpush.bf16.msra.mxu0 %v458
  %609 = vmatpush.bf16.msra.mxu0 %v455
  %610 = vmatpush.bf16.msra.mxu0 %v452
  %611 = vmatpush.bf16.msra.mxu0 %v449
  %612 = vmatpush.bf16.msra.mxu0 %v446
  %613 = vmatpush.bf16.msra.mxu0 %v443
  %614 = vmatpush.bf16.msra.mxu0 %v440
  %615 = vmatpush.bf16.msra.mxu0 %v437
  %616 = vmatmul.bf16.gmra.mxu0 %v67
  %v617 = vpop.f32.mrf.mxu0
  %v618 = vadd.f32 %v605, %v617
  %v619 = vpop.f32.mrf.mxu0
  %620 = vdwg.mxu0
  %621 = vmatpush.bf16.msra.mxu0 %v482
  %622 = vmatpush.bf16.msra.mxu0 %v479
  %623 = vmatpush.bf16.msra.mxu0 %v476
  %624 = vmatpush.bf16.msra.mxu0 %v473
  %625 = vmatpush.bf16.msra.mxu0 %v470
  %626 = vmatpush.bf16.msra.mxu0 %v467
  %627 = vmatpush.bf16.msra.mxu0 %v464
  %628 = vmatpush.bf16.msra.mxu0 %v461
  %629 = vmatmul.bf16.gmra.mxu0 %v63
  %v630 = vpop.f32.mrf.mxu0
  %v631 = vadd.f32 %v618, %v630
  %v632 = vpop.f32.mrf.mxu0
  %633 = vdwg.mxu0
  %634 = vmatpush.bf16.msra.mxu0 %v435
  %635 = vmatpush.bf16.msra.mxu0 %v432
  %636 = vmatpush.bf16.msra.mxu0 %v429
  %637 = vmatpush.bf16.msra.mxu0 %v426
  %638 = vmatpush.bf16.msra.mxu0 %v423
  %639 = vmatpush.bf16.msra.mxu0 %v420
  %640 = vmatpush.bf16.msra.mxu0 %v417
  %641 = vmatpush.bf16.msra.mxu0 %v414
  %642 = vmatmul.bf16.gmra.mxu0 %v62
  %v643 = vpop.f32.mrf.mxu0
  %v644 = vadd.f32 %v168, %v643
  %v645 = vpop.f32.mrf.mxu0
  %646 = vdwg.mxu0
  %647 = vmatpush.bf16.msra.mxu0 %v459
  %648 = vmatpush.bf16.msra.mxu0 %v456
  %649 = vmatpush.bf16.msra.mxu0 %v453
  %650 = vmatpush.bf16.msra.mxu0 %v450
  %651 = vmatpush.bf16.msra.mxu0 %v447
  %652 = vmatpush.bf16.msra.mxu0 %v444
  %653 = vmatpush.bf16.msra.mxu0 %v441
  %654 = vmatpush.bf16.msra.mxu0 %v438
  %655 = vmatmul.bf16.gmra.mxu0 %v67
  %v656 = vpop.f32.mrf.mxu0
  %v657 = vadd.f32 %v644, %v656
  %v658 = vpop.f32.mrf.mxu0
  %659 = vdwg.mxu0
  %660 = vmatpush.bf16.msra.mxu0 %v483
  %661 = vmatpush.bf16.msra.mxu0 %v480
  %662 = vmatpush.bf16.msra.mxu0 %v477
  %663 = vmatpush.bf16.msra.mxu0 %v474
  %664 = vmatpush.bf16.msra.mxu0 %v471
  %665 = vmatpush.bf16.msra.mxu0 %v468
  %666 = vmatpush.bf16.msra.mxu0 %v465
  %667 = vmatpush.bf16.msra.mxu0 %v462
  %668 = vmatmul.bf16.gmra.mxu0 %v63
  %v669 = vpop.f32.mrf.mxu0
  %v670 = vadd.f32 %v657, %v669
  %v671 = vpop.f32.mrf.mxu0
  %672 = vdwg.mxu0
  %v673 = vrot.slane %v592, 4
  %v674 = vadd.f32 %v592, %v673
  %v675 = vrot.slane %v674, 2
  %v676 = vadd.f32 %v674, %v675
  %v677 = vrot.slane %v676, 1
  %v678 = vadd.f32 %v676, %v677
  %v679 = vrot.slane %v631, 4
  %v680 = vadd.f32 %v631, %v679
  %v681 = vrot.slane %v680, 2
  %v682 = vadd.f32 %v680, %v681
  %v683 = vrot.slane %v682, 1
  %v684 = vadd.f32 %v682, %v683
  %vm685 = vcmask 261120
  %v686 = vsel %vm685, %v670, 0.0
  %v687 = vrot.slane %v686, 4
  %v688 = vadd.f32 %v686, %v687
  %v689 = vrot.slane %v688, 2
  %v690 = vadd.f32 %v688, %v689
  %v691 = vrot.slane %v690, 1
  %v692 = vadd.f32 %v690, %v691
  %v693 = vrcp.pop 8.0
  %v694 = vmul.f32 8.0, %v693
  %v695 = vsub.f32 1.0, %v694
  %v696 = vmul.f32 %v693, %v695
  %v697 = vadd.f32 %v693, %v696
  %vm698 = vweird.f32 %v693
  %v699 = vsel %vm698, %v693, %v697
  %v700 = vmul.f32 %v678, %v699
  %v701 = vmul.f32 %v684, %v699
  %v702 = vmul.f32 %v692, %v699
  %v703 = vsub.f32 %v592, %v700
  %v704 = vsub.f32 %v631, %v701
  %v705 = vsub.f32 %v670, %v702
  %v706 = vmul.f32 %v703, %v703
  %v707 = vmul.f32 %v704, %v704
  %v708 = vmul.f32 %v705, %v705
  %v709 = vrot.slane %v706, 4
  %v710 = vadd.f32 %v706, %v709
  %v711 = vrot.slane %v710, 2
  %v712 = vadd.f32 %v710, %v711
  %v713 = vrot.slane %v712, 1
  %v714 = vadd.f32 %v712, %v713
  %v715 = vrot.slane %v707, 4
  %v716 = vadd.f32 %v707, %v715
  %v717 = vrot.slane %v716, 2
  %v718 = vadd.f32 %v716, %v717
  %v719 = vrot.slane %v718, 1
  %v720 = vadd.f32 %v718, %v719
  %v721 = vsel %vm685, %v708, 0.0
  %v722 = vrot.slane %v721, 4
  %v723 = vadd.f32 %v721, %v722
  %v724 = vrot.slane %v723, 2
  %v725 = vadd.f32 %v723, %v724
  %v726 = vrot.slane %v725, 1
  %v727 = vadd.f32 %v725, %v726
  %v728 = vrcp.pop 7.0
  %v729 = vmul.f32 7.0, %v728
  %v730 = vsub.f32 1.0, %v729
  %v731 = vmul.f32 %v728, %v730
  %v732 = vadd.f32 %v728, %v731
  %vm733 = vweird.f32 %v728
  %v734 = vsel %vm733, %v728, %v732
  %v735 = vmul.f32 %v714, %v734
  %v736 = vmul.f32 %v720, %v734
  %v737 = vmul.f32 %v727, %v734
  %v738 = vadd.f32 %v735, 1e-09
  %v739 = vadd.f32 %v736, 1e-09
  %v740 = vadd.f32 %v737, 1e-09
  %v741 = vrsqrt.pop %v738
  %v742 = vmul.f32 %v741, %v738
  %v743 = vmul.f32 %v742, %v741
  %v744 = vmul.f32 0.5, %v743
  %v745 = vsub.f32 1.5, %v744
  %v746 = vmul.f32 %v741, %v745
  %vm747 = vweird.f32 %v738
  %vm748 = vweird.f32 %v741
  %vm749 = vmor %vm747, %vm748
  %v750 = vsel %vm749, %v741, %v746
  %v751 = vrsqrt.pop %v739
  %v752 = vmul.f32 %v751, %v739
  %v753 = vmul.f32 %v752, %v751
  %v754 = vmul.f32 0.5, %v753
  %v755 = vsub.f32 1.5, %v754
  %v756 = vmul.f32 %v751, %v755
  %vm757 = vweird.f32 %v739
  %vm758 = vweird.f32 %v751
  %vm759 = vmor %vm757, %vm758
  %v760 = vsel %vm759, %v751, %v756
  %v761 = vrsqrt.pop %v740
  %v762 = vmul.f32 %v761, %v740
  %v763 = vmul.f32 %v762, %v761
  %v764 = vmul.f32 0.5, %v763
  %v765 = vsub.f32 1.5, %v764
  %v766 = vmul.f32 %v761, %v765
  %vm767 = vweird.f32 %v740
  %vm768 = vweird.f32 %v761
  %vm769 = vmor %vm767, %vm768
  %v770 = vsel %vm769, %v761, %v766
  %v771 = vmul.f32 %v703, %v750
  %v772 = vmul.f32 %v704, %v760
  %v773 = vmul.f32 %v705, %v770
  %v774 = vmul.f32 %v771, 0.5
  %v775 = vmul.f32 %v772, 0.5
  %v776 = vmul.f32 %v773, 0.5
  %v777 = vtanh.pop %v774
  %v778 = vtanh.pop %v775
  %v779 = vtanh.pop %v776
  %v780 = vmul.f32 %v777, 0.5
  %v781 = vmul.f32 %v778, 0.5
  %v782 = vmul.f32 %v779, 0.5
  %v783 = vadd.f32 %v780, 0.5
  %v784 = vadd.f32 %v781, 0.5
  %v785 = vadd.f32 %v782, 0.5
  %s786 = ssub.f32 1.0, %s60
  %v787 = vstv %s786
  %v788 = vmul.f32 %v787, %v783
  %v789 = vmul.f32 %v787, %v784
  %v790 = vmul.f32 %v787, %v785
  %v791 = vstv %s60
  %v792 = vadd.f32 %v791, %v788
  %v793 = vadd.f32 %v791, %v789
  %v794 = vadd.f32 %v791, %v790
  %v795 = vmul.f32 %v592, %v792
  %v796 = vmul.f32 %v631, %v793
  %v797 = vmul.f32 %v670, %v794
  %v798 = vpack.c.bf16 %v795, %v795
  %v799 = vpack.c.bf16 %v796, %v796
  %v800 = vpack.c.bf16 %v797, %v797
  %v801 = vld [vmem:[%s5] sm:$0xf]
  %v802 = vld [vmem:[%s5 + $0x4] sm:$0xf]
  %v803 = vld [vmem:[%s5 + $0x8] sm:$0xf]
  %v804 = vld [vmem:[%s5 + $0xc] sm:$0xf]
  %v805 = vld [vmem:[%s5 + $0x10] sm:$0xf]
  %v806 = vld [vmem:[%s5 + $0x14] sm:$0xf]
  %v807 = vld [vmem:[%s5 + $0x18] sm:$0xf]
  %v808 = vld [vmem:[%s5 + $0x1c] sm:$0xf]
  %v809 = vld [vmem:[%s5 + $0x20] sm:$0xf]
  %v810 = vld [vmem:[%s5 + $0x24] sm:$0xf]
  %v811 = vld [vmem:[%s5 + $0x28] sm:$0xf]
  %v812 = vld [vmem:[%s5 + $0x2c] sm:$0xf]
  %v813 = vld [vmem:[%s5 + $0x30] sm:$0xf]
  %v814 = vld [vmem:[%s5 + $0x34] sm:$0xf]
  %v815 = vld [vmem:[%s5 + $0x38] sm:$0xf]
  %v816 = vld [vmem:[%s5 + $0x3c] sm:$0xf]
  %v817 = vld [vmem:[%s5 + $0x40] sm:$0xf]
  %v818 = vld [vmem:[%s5 + $0x44] sm:$0xf]
  %v819 = vld [vmem:[%s5 + $0x48] sm:$0xf]
  %v820 = vld [vmem:[%s5 + $0x4c] sm:$0xf]
  %v821 = vld [vmem:[%s5 + $0x50] sm:$0xf]
  %v822 = vld [vmem:[%s5 + $0x54] sm:$0xf]
  %v823 = vld [vmem:[%s5 + $0x58] sm:$0xf]
  %v824 = vld [vmem:[%s5 + $0x5c] sm:$0xf]
  %v825 = vld [vmem:[%s5 + $0x60] sm:$0xf]
  %v826 = vld [vmem:[%s5 + $0x64] sm:$0xf]
  %v827 = vld [vmem:[%s5 + $0x68] sm:$0xf]
  %v828 = vld [vmem:[%s5 + $0x6c] sm:$0xf]
  %v829 = vld [vmem:[%s5 + $0x70] sm:$0xf]
  %v830 = vld [vmem:[%s5 + $0x74] sm:$0xf]
  %v831 = vld [vmem:[%s5 + $0x78] sm:$0xf]
  %v832 = vld [vmem:[%s5 + $0x7c] sm:$0xf]
  %v833 = vld [vmem:[%s5 + $0x80] sm:$0xf]
  %v834 = vld [vmem:[%s5 + $0x84] sm:$0xf]
  %v835 = vld [vmem:[%s5 + $0x88] sm:$0xf]
  %v836 = vld [vmem:[%s5 + $0x8c] sm:$0xf]
  %v837 = vld [vmem:[#allocation2] sm:$0x1]
  %v839 = vperm.slane %v837, 0
  %840 = vset.pattern.permute.xlu0 0
  %841 = vperm.xlu0 %840, %v839
  %v842 = vpop.permute.xlu0 %841
  %v880 = vunpack.c.l.b16 %v801
  %v881 = vunpack.c.l.b16 %v802
  %v882 = vunpack.c.l.b16 %v803
  %v883 = vunpack.c.l.b16 %v804
  %v884 = vunpack.c.l.b16 %v805
  %v885 = vunpack.c.l.b16 %v806
  %v886 = vunpack.c.l.b16 %v807
  %v887 = vunpack.c.l.b16 %v808
  %v888 = vunpack.c.l.b16 %v809
  %v889 = vunpack.c.l.b16 %v810
  %v890 = vunpack.c.l.b16 %v811
  %v891 = vunpack.c.l.b16 %v812
  %v892 = vunpack.c.l.b16 %v813
  %v893 = vunpack.c.l.b16 %v814
  %v894 = vunpack.c.l.b16 %v815
  %v895 = vunpack.c.l.b16 %v816
  %v896 = vunpack.c.l.b16 %v817
  %v897 = vunpack.c.l.b16 %v818
  %v898 = vunpack.c.l.b16 %v819
  %v899 = vunpack.c.l.b16 %v820
  %v900 = vunpack.c.l.b16 %v821
  %v901 = vunpack.c.l.b16 %v822
  %v902 = vunpack.c.l.b16 %v823
  %v903 = vunpack.c.l.b16 %v824
  %v904 = vunpack.c.l.b16 %v825
  %v905 = vunpack.c.l.b16 %v826
  %v906 = vunpack.c.l.b16 %v827
  %v907 = vunpack.c.l.b16 %v828
  %v908 = vunpack.c.l.b16 %v829
  %v909 = vunpack.c.l.b16 %v830
  %v910 = vunpack.c.l.b16 %v831
  %v911 = vunpack.c.l.b16 %v832
  %v912 = vunpack.c.l.b16 %v833
  %v913 = vunpack.c.l.b16 %v834
  %v914 = vunpack.c.l.b16 %v835
  %v915 = vunpack.c.l.b16 %v836
  %v916 = vpack.c.b16 %v881, %v880
  %v917 = vpack.c.b16 %v883, %v882
  %v918 = vpack.c.b16 %v885, %v884
  %v919 = vpack.c.b16 %v887, %v886
  %v920 = vpack.c.b16 %v889, %v888
  %v921 = vpack.c.b16 %v891, %v890
  %v922 = vpack.c.b16 %v893, %v892
  %v923 = vpack.c.b16 %v895, %v894
  %v924 = vpack.c.b16 %v897, %v896
  %v925 = vpack.c.b16 %v899, %v898
  %v926 = vpack.c.b16 %v901, %v900
  %v927 = vpack.c.b16 %v903, %v902
  %v928 = vpack.c.b16 %v905, %v904
  %v929 = vpack.c.b16 %v907, %v906
  %v930 = vpack.c.b16 %v909, %v908
  %v931 = vpack.c.b16 %v911, %v910
  %v932 = vpack.c.b16 %v913, %v912
  %v933 = vpack.c.b16 %v915, %v914
  %v953 = vsel %vm685, %v800, 0
  %955 = vmatpush.bf16.msra.mxu0 %v923
  %956 = vmatpush.bf16.msra.mxu0 %v922
  %957 = vmatpush.bf16.msra.mxu0 %v921
  %958 = vmatpush.bf16.msra.mxu0 %v920
  %959 = vmatpush.bf16.msra.mxu0 %v919
  %960 = vmatpush.bf16.msra.mxu0 %v918
  %961 = vmatpush.bf16.msra.mxu0 %v917
  %962 = vmatpush.bf16.msra.mxu0 %v916
  %963 = vmatmul.bf16.gmra.mxu0 %v798
  %v964 = vpop.f32.mrf.mxu0
  %v965 = vadd.f32 %v842, %v964
  %v966 = vpop.f32.mrf.mxu0
  %967 = vdwg.mxu0
  %968 = vmatpush.bf16.msra.mxu0 %v931
  %969 = vmatpush.bf16.msra.mxu0 %v930
  %970 = vmatpush.bf16.msra.mxu0 %v929
  %971 = vmatpush.bf16.msra.mxu0 %v928
  %972 = vmatpush.bf16.msra.mxu0 %v927
  %973 = vmatpush.bf16.msra.mxu0 %v926
  %974 = vmatpush.bf16.msra.mxu0 %v925
  %975 = vmatpush.bf16.msra.mxu0 %v924
  %976 = vmatmul.bf16.gmra.mxu0 %v799
  %v977 = vpop.f32.mrf.mxu0
  %v978 = vadd.f32 %v965, %v977
  %v979 = vpop.f32.mrf.mxu0
  %980 = vdwg.mxu0
  %981 = vmatpush.bf16.msra.mxu0 0
  %982 = vmatpush.bf16.msra.mxu0 0
  %983 = vmatpush.bf16.msra.mxu0 0
  %984 = vmatpush.bf16.msra.mxu0 0
  %985 = vmatpush.bf16.msra.mxu0 0
  %986 = vmatpush.bf16.msra.mxu0 0
  %987 = vmatpush.bf16.msra.mxu0 %v933
  %988 = vmatpush.bf16.msra.mxu0 %v932
  %989 = vmatmul.bf16.gmra.mxu0 %v953
  %v990 = vpop.f32.mrf.mxu0
  %v991 = vadd.f32 %v978, %v990
  %v992 = vpop.f32.mrf.mxu0
  %993 = vdwg.mxu0
  %v994 = vmul.f32 %v991, %v64
  %v995 = vld [vmem:[%s2] sm:$0xf]
  %v996 = vld [vmem:[%s7] sm:$0xff]
  %v997 = vld [vmem:[%s7 + $0x8] sm:$0xff]
  %v998 = vld [vmem:[%s7 + $0x10] sm:$0xff]
  %v999 = vld [vmem:[%s7 + $0x18] sm:$0xff]
  %v1000 = vpack.c.bf16 %v994, %v994
  %v1001 = vld [vmem:[%s8] sm:$0xff]
  %v1002 = vld [vmem:[%s8 + $0x8] sm:$0xff]
  %v1003 = vld [vmem:[%s8 + $0x10] sm:$0xff]
  %v1004 = vld [vmem:[%s8 + $0x18] sm:$0xff]
  %v1005 = vld [vmem:[%s8 + $0x20] sm:$0xff]
  %v1006 = vld [vmem:[%s8 + $0x28] sm:$0xff]
  %v1007 = vld [vmem:[%s8 + $0x30] sm:$0xff]
  %v1008 = vld [vmem:[%s8 + $0x38] sm:$0xff]
  %v1009 = vld [vmem:[%s8 + $0x40] sm:$0xff]
  %v1010 = vld [vmem:[%s8 + $0x48] sm:$0xff]
  %v1011 = vld [vmem:[%s8 + $0x50] sm:$0xff]
  %v1012 = vld [vmem:[%s8 + $0x58] sm:$0xff]
  %v1013 = vld [vmem:[%s8 + $0x60] sm:$0xff]
  %v1014 = vld [vmem:[%s8 + $0x68] sm:$0xff]
  %v1015 = vld [vmem:[%s8 + $0x70] sm:$0xff]
  %v1016 = vld [vmem:[%s8 + $0x78] sm:$0xff]
  %v1033 = vunpack.c.l.b16 %v1001
  %v1034 = vunpack.c.h.b16 %v1001
  %v1035 = vunpack.c.l.b16 %v1002
  %v1036 = vunpack.c.h.b16 %v1002
  %v1037 = vunpack.c.l.b16 %v1003
  %v1038 = vunpack.c.h.b16 %v1003
  %v1039 = vunpack.c.l.b16 %v1004
  %v1040 = vunpack.c.h.b16 %v1004
  %v1041 = vunpack.c.l.b16 %v1005
  %v1042 = vunpack.c.h.b16 %v1005
  %v1043 = vunpack.c.l.b16 %v1006
  %v1044 = vunpack.c.h.b16 %v1006
  %v1045 = vunpack.c.l.b16 %v1007
  %v1046 = vunpack.c.h.b16 %v1007
  %v1047 = vunpack.c.l.b16 %v1008
  %v1048 = vunpack.c.h.b16 %v1008
  %v1049 = vunpack.c.l.b16 %v1009
  %v1050 = vunpack.c.h.b16 %v1009
  %v1051 = vunpack.c.l.b16 %v1010
  %v1052 = vunpack.c.h.b16 %v1010
  %v1053 = vunpack.c.l.b16 %v1011
  %v1054 = vunpack.c.h.b16 %v1011
  %v1055 = vunpack.c.l.b16 %v1012
  %v1056 = vunpack.c.h.b16 %v1012
  %v1057 = vunpack.c.l.b16 %v1013
  %v1058 = vunpack.c.h.b16 %v1013
  %v1059 = vunpack.c.l.b16 %v1014
  %v1060 = vunpack.c.h.b16 %v1014
  %v1061 = vunpack.c.l.b16 %v1015
  %v1062 = vunpack.c.h.b16 %v1015
  %v1063 = vunpack.c.l.b16 %v1016
  %v1064 = vunpack.c.h.b16 %v1016
  %v1065 = vpack.c.b16 %v1035, %v1033
  %v1066 = vpack.c.b16 %v1036, %v1034
  %v1067 = vpack.c.b16 %v1039, %v1037
  %v1068 = vpack.c.b16 %v1040, %v1038
  %v1069 = vpack.c.b16 %v1043, %v1041
  %v1070 = vpack.c.b16 %v1044, %v1042
  %v1071 = vpack.c.b16 %v1047, %v1045
  %v1072 = vpack.c.b16 %v1048, %v1046
  %v1073 = vpack.c.b16 %v1051, %v1049
  %v1074 = vpack.c.b16 %v1052, %v1050
  %v1075 = vpack.c.b16 %v1055, %v1053
  %v1076 = vpack.c.b16 %v1056, %v1054
  %v1077 = vpack.c.b16 %v1059, %v1057
  %v1078 = vpack.c.b16 %v1060, %v1058
  %v1079 = vpack.c.b16 %v1063, %v1061
  %v1080 = vpack.c.b16 %v1064, %v1062
  %1097 = vmatpush.bf16.msra.mxu0 %v1079
  %1098 = vmatpush.bf16.msra.mxu0 %v1077
  %1099 = vmatpush.bf16.msra.mxu0 %v1075
  %1100 = vmatpush.bf16.msra.mxu0 %v1073
  %1101 = vmatpush.bf16.msra.mxu0 %v1071
  %1102 = vmatpush.bf16.msra.mxu0 %v1069
  %1103 = vmatpush.bf16.msra.mxu0 %v1067
  %1104 = vmatpush.bf16.msra.mxu0 %v1065
  %1105 = vmatmul.bf16.gmra.mxu0 %v1000
  %v1106 = vpop.f32.mrf.mxu0
  %v1107 = vadd.f32 0.0, %v1106
  %v1108 = vpop.f32.mrf.mxu0
  %1109 = vdwg.mxu0
  %1110 = vmatpush.bf16.msra.mxu0 %v1080
  %1111 = vmatpush.bf16.msra.mxu0 %v1078
  %1112 = vmatpush.bf16.msra.mxu0 %v1076
  %1113 = vmatpush.bf16.msra.mxu0 %v1074
  %1114 = vmatpush.bf16.msra.mxu0 %v1072
  %1115 = vmatpush.bf16.msra.mxu0 %v1070
  %1116 = vmatpush.bf16.msra.mxu0 %v1068
  %1117 = vmatpush.bf16.msra.mxu0 %v1066
  %1118 = vmatmul.bf16.gmra.mxu0 %v1000
  %v1119 = vpop.f32.mrf.mxu0
  %v1120 = vadd.f32 0.0, %v1119
  %v1121 = vpop.f32.mrf.mxu0
  %1122 = vdwg.mxu0
  %v1127 = vunpack.c.l.b16 %v996
  %v1128 = vunpack.c.h.b16 %v996
  %v1129 = vunpack.c.l.b16 %v997
  %v1130 = vunpack.c.h.b16 %v997
  %v1131 = vunpack.c.l.b16 %v998
  %v1132 = vunpack.c.h.b16 %v998
  %v1133 = vunpack.c.l.b16 %v999
  %v1134 = vunpack.c.h.b16 %v999
  %v1135 = vpack.c.b16 %v1129, %v1127
  %v1136 = vpack.c.b16 %v1130, %v1128
  %v1137 = vpack.c.b16 %v1133, %v1131
  %v1138 = vpack.c.b16 %v1134, %v1132
  %v1144 = vsel %vm685, %v995, 0
  %1146 = vmatpush.bf16.msra.mxu0 0
  %1147 = vmatpush.bf16.msra.mxu0 0
  %1148 = vmatpush.bf16.msra.mxu0 0
  %1149 = vmatpush.bf16.msra.mxu0 0
  %1150 = vmatpush.bf16.msra.mxu0 0
  %1151 = vmatpush.bf16.msra.mxu0 0
  %1152 = vmatpush.bf16.msra.mxu0 %v1137
  %1153 = vmatpush.bf16.msra.mxu0 %v1135
  %1154 = vmatmul.bf16.gmra.mxu0 %v1144
  %v1155 = vpop.f32.mrf.mxu0
  %v1156 = vadd.f32 %v1107, %v1155
  %v1157 = vpop.f32.mrf.mxu0
  %1158 = vdwg.mxu0
  %1159 = vmatpush.bf16.msra.mxu0 0
  %1160 = vmatpush.bf16.msra.mxu0 0
  %1161 = vmatpush.bf16.msra.mxu0 0
  %1162 = vmatpush.bf16.msra.mxu0 0
  %1163 = vmatpush.bf16.msra.mxu0 0
  %1164 = vmatpush.bf16.msra.mxu0 0
  %1165 = vmatpush.bf16.msra.mxu0 %v1138
  %1166 = vmatpush.bf16.msra.mxu0 %v1136
  %1167 = vmatmul.bf16.gmra.mxu0 %v1144
  %v1168 = vpop.f32.mrf.mxu0
  %v1169 = vadd.f32 %v1120, %v1168
  %v1170 = vpop.f32.mrf.mxu0
  %1171 = vdwg.mxu0
  %v1172 = vld [vmem:[%s9] sm:$0x3]
  %v1174 = vperm.slane %v1172, 0
  %v1175 = vperm.slane %v1172, 1
  %v1178 = vadd.f32 %v1156, %v1174
  %v1179 = vadd.f32 %v1169, %v1175
  %v1180 = vrot.slane %v1178, 4
  %v1181 = vadd.f32 %v1178, %v1180
  %v1182 = vrot.slane %v1181, 2
  %v1183 = vadd.f32 %v1181, %v1182
  %v1184 = vrot.slane %v1183, 1
  %v1185 = vadd.f32 %v1183, %v1184
  %vm1186 = vcmask 588800
  %v1187 = vsel %vm1186, %v1179, 0.0
  %v1188 = vrot.slane %v1187, 4
  %v1189 = vadd.f32 %v1187, %v1188
  %v1190 = vrot.slane %v1189, 2
  %v1191 = vadd.f32 %v1189, %v1190
  %v1192 = vrot.slane %v1191, 1
  %v1193 = vadd.f32 %v1191, %v1192
  %v1194 = vmul.f32 %v1185, %v699
  %v1195 = vmul.f32 %v1193, %v699
  %v1196 = vsub.f32 %v1178, %v1194
  %v1197 = vsub.f32 %v1179, %v1195
  %v1198 = vmul.f32 %v1196, %v1196
  %v1199 = vmul.f32 %v1197, %v1197
  %v1200 = vrot.slane %v1198, 4
  %v1201 = vadd.f32 %v1198, %v1200
  %v1202 = vrot.slane %v1201, 2
  %v1203 = vadd.f32 %v1201, %v1202
  %v1204 = vrot.slane %v1203, 1
  %v1205 = vadd.f32 %v1203, %v1204
  %v1206 = vsel %vm1186, %v1199, 0.0
  %v1207 = vrot.slane %v1206, 4
  %v1208 = vadd.f32 %v1206, %v1207
  %v1209 = vrot.slane %v1208, 2
  %v1210 = vadd.f32 %v1208, %v1209
  %v1211 = vrot.slane %v1210, 1
  %v1212 = vadd.f32 %v1210, %v1211
  %v1213 = vmul.f32 %v1205, %v734
  %v1214 = vmul.f32 %v1212, %v734
  %v1215 = vadd.f32 %v1213, 1e-09
  %v1216 = vadd.f32 %v1214, 1e-09
  %v1217 = vrsqrt.pop %v1215
  %v1218 = vmul.f32 %v1217, %v1215
  %v1219 = vmul.f32 %v1218, %v1217
  %v1220 = vmul.f32 0.5, %v1219
  %v1221 = vsub.f32 1.5, %v1220
  %v1222 = vmul.f32 %v1217, %v1221
  %vm1223 = vweird.f32 %v1215
  %vm1224 = vweird.f32 %v1217
  %vm1225 = vmor %vm1223, %vm1224
  %v1226 = vsel %vm1225, %v1217, %v1222
  %v1227 = vrsqrt.pop %v1216
  %v1228 = vmul.f32 %v1227, %v1216
  %v1229 = vmul.f32 %v1228, %v1227
  %v1230 = vmul.f32 0.5, %v1229
  %v1231 = vsub.f32 1.5, %v1230
  %v1232 = vmul.f32 %v1227, %v1231
  %vm1233 = vweird.f32 %v1216
  %vm1234 = vweird.f32 %v1227
  %vm1235 = vmor %vm1233, %vm1234
  %v1236 = vsel %vm1235, %v1227, %v1232
  %v1237 = vmul.f32 %v1196, %v1226
  %v1238 = vmul.f32 %v1197, %v1236
  %v1239 = vmul.f32 %v1237, 0.5
  %v1240 = vmul.f32 %v1238, 0.5
  %v1241 = vtanh.pop %v1239
  %v1242 = vtanh.pop %v1240
  %v1243 = vmul.f32 %v1241, 0.5
  %v1244 = vmul.f32 %v1242, 0.5
  %v1245 = vadd.f32 %v1243, 0.5
  %v1246 = vadd.f32 %v1244, 0.5
  %s1247 = ssub.f32 1.0, %s61
  %v1248 = vstv %s1247
  %v1249 = vmul.f32 %v1248, %v1245
  %v1250 = vmul.f32 %v1248, %v1246
  %v1251 = vstv %s61
  %v1252 = vadd.f32 %v1251, %v1249
  %v1253 = vadd.f32 %v1251, %v1250
  %v1254 = vmul.f32 %v1178, %v1252
  %v1255 = vmul.f32 %v1179, %v1253
  %v1256 = vpack.c.bf16 %v1254, %v1254
  %v1257 = vpack.c.bf16 %v1255, %v1255
  %v1258 = vld [vmem:[%s10] sm:$0xf]
  %v1259 = vld [vmem:[%s10 + $0x4] sm:$0xf]
  %v1260 = vld [vmem:[%s10 + $0x8] sm:$0xf]
  %v1261 = vld [vmem:[%s10 + $0xc] sm:$0xf]
  %v1262 = vld [vmem:[%s10 + $0x10] sm:$0xf]
  %v1263 = vld [vmem:[%s10 + $0x14] sm:$0xf]
  %v1264 = vld [vmem:[%s10 + $0x18] sm:$0xf]
  %v1265 = vld [vmem:[%s10 + $0x1c] sm:$0xf]
  %v1266 = vld [vmem:[%s10 + $0x20] sm:$0xf]
  %v1267 = vld [vmem:[%s10 + $0x24] sm:$0xf]
  %v1268 = vld [vmem:[%s10 + $0x28] sm:$0xf]
  %v1269 = vld [vmem:[%s10 + $0x2c] sm:$0xf]
  %v1270 = vld [vmem:[%s10 + $0x30] sm:$0xf]
  %v1271 = vld [vmem:[%s10 + $0x34] sm:$0xf]
  %v1272 = vld [vmem:[%s10 + $0x38] sm:$0xf]
  %v1273 = vld [vmem:[%s10 + $0x3c] sm:$0xf]
  %v1274 = vld [vmem:[%s10 + $0x40] sm:$0xf]
  %v1275 = vld [vmem:[%s10 + $0x44] sm:$0xf]
  %v1276 = vld [vmem:[%s10 + $0x48] sm:$0xf]
  %v1277 = vld [vmem:[%s10 + $0x4c] sm:$0xf]
  %v1278 = vld [vmem:[%s10 + $0x50] sm:$0xf]
  %v1279 = vld [vmem:[%s10 + $0x54] sm:$0xf]
  %v1280 = vld [vmem:[%s10 + $0x58] sm:$0xf]
  %v1281 = vld [vmem:[%s10 + $0x5c] sm:$0xf]
  %v1282 = vld [vmem:[%s10 + $0x60] sm:$0xf]
  %v1283 = vld [vmem:[%s11] sm:$0x1]
  %v1285 = vperm.slane %v1283, 0
  %v1312 = vunpack.c.l.b16 %v1258
  %v1313 = vunpack.c.l.b16 %v1259
  %v1314 = vunpack.c.l.b16 %v1260
  %v1315 = vunpack.c.l.b16 %v1261
  %v1316 = vunpack.c.l.b16 %v1262
  %v1317 = vunpack.c.l.b16 %v1263
  %v1318 = vunpack.c.l.b16 %v1264
  %v1319 = vunpack.c.l.b16 %v1265
  %v1320 = vunpack.c.l.b16 %v1266
  %v1321 = vunpack.c.l.b16 %v1267
  %v1322 = vunpack.c.l.b16 %v1268
  %v1323 = vunpack.c.l.b16 %v1269
  %v1324 = vunpack.c.l.b16 %v1270
  %v1325 = vunpack.c.l.b16 %v1271
  %v1326 = vunpack.c.l.b16 %v1272
  %v1327 = vunpack.c.l.b16 %v1273
  %v1328 = vunpack.c.l.b16 %v1274
  %v1329 = vunpack.c.l.b16 %v1275
  %v1330 = vunpack.c.l.b16 %v1276
  %v1331 = vunpack.c.l.b16 %v1277
  %v1332 = vunpack.c.l.b16 %v1278
  %v1333 = vunpack.c.l.b16 %v1279
  %v1334 = vunpack.c.l.b16 %v1280
  %v1335 = vunpack.c.l.b16 %v1281
  %v1336 = vunpack.c.l.b16 %v1282
  %v1337 = vpack.c.b16 %v1313, %v1312
  %v1338 = vpack.c.b16 %v1315, %v1314
  %v1339 = vpack.c.b16 %v1317, %v1316
  %v1340 = vpack.c.b16 %v1319, %v1318
  %v1341 = vpack.c.b16 %v1321, %v1320
  %v1342 = vpack.c.b16 %v1323, %v1322
  %v1343 = vpack.c.b16 %v1325, %v1324
  %v1344 = vpack.c.b16 %v1327, %v1326
  %v1345 = vpack.c.b16 %v1329, %v1328
  %v1346 = vpack.c.b16 %v1331, %v1330
  %v1347 = vpack.c.b16 %v1333, %v1332
  %v1348 = vpack.c.b16 %v1335, %v1334
  %v1349 = vpack.c.b16 %v1336, %v1336
  %v1363 = vsel %vm1186, %v1257, 0
  %vm1365 = vcmask 1043456
  %v1367 = vsel %vm1365, %v1349, 0
  %1369 = vmatpush.bf16.msra.mxu0 %v1344
  %1370 = vmatpush.bf16.msra.mxu0 %v1343
  %1371 = vmatpush.bf16.msra.mxu0 %v1342
  %1372 = vmatpush.bf16.msra.mxu0 %v1341
  %1373 = vmatpush.bf16.msra.mxu0 %v1340
  %1374 = vmatpush.bf16.msra.mxu0 %v1339
  %1375 = vmatpush.bf16.msra.mxu0 %v1338
  %1376 = vmatpush.bf16.msra.mxu0 %v1337
  %1377 = vmatmul.bf16.gmra.mxu0 %v1256
  %v1378 = vpop.f32.mrf.mxu0
  %v1379 = vadd.f32 %v1285, %v1378
  %v1380 = vpop.f32.mrf.mxu0
  %1381 = vdwg.mxu0
  %1382 = vmatpush.bf16.msra.mxu0 0
  %1383 = vmatpush.bf16.msra.mxu0 0
  %1384 = vmatpush.bf16.msra.mxu0 0
  %1385 = vmatpush.bf16.msra.mxu0 %v1367
  %1386 = vmatpush.bf16.msra.mxu0 %v1348
  %1387 = vmatpush.bf16.msra.mxu0 %v1347
  %1388 = vmatpush.bf16.msra.mxu0 %v1346
  %1389 = vmatpush.bf16.msra.mxu0 %v1345
  %1390 = vmatmul.bf16.gmra.mxu0 %v1363
  %v1391 = vpop.f32.mrf.mxu0
  %v1392 = vadd.f32 %v1379, %v1391
  %v1393 = vpop.f32.mrf.mxu0
  %1394 = vdwg.mxu0
  %vm1395 = vcmask 654336
  %v1396 = vsel %vm1395, %v1392, 0.0
  %v1397 = vrot.slane %v1396, 4
  %v1398 = vadd.f32 %v1396, %v1397
  %v1399 = vrot.slane %v1398, 2
  %v1400 = vadd.f32 %v1398, %v1399
  %v1401 = vrot.slane %v1400, 1
  %v1402 = vadd.f32 %v1400, %v1401
  %v1403 = vmul.f32 %v1402, %v699
  %v1404 = vsub.f32 %v1392, %v1403
  %v1405 = vmul.f32 %v1404, %v1404
  %v1406 = vsel %vm1395, %v1405, 0.0
  %v1407 = vrot.slane %v1406, 4
  %v1408 = vadd.f32 %v1406, %v1407
  %v1409 = vrot.slane %v1408, 2
  %v1410 = vadd.f32 %v1408, %v1409
  %v1411 = vrot.slane %v1410, 1
  %v1412 = vadd.f32 %v1410, %v1411
  %v1413 = vmul.f32 %v1412, %v734
  %v1414 = vadd.f32 %v1413, 1e-09
  %v1415 = vrsqrt.pop %v1414
  %v1416 = vmul.f32 %v1415, %v1414
  %v1417 = vmul.f32 %v1416, %v1415
  %v1418 = vmul.f32 0.5, %v1417
  %v1419 = vsub.f32 1.5, %v1418
  %v1420 = vmul.f32 %v1415, %v1419
  %vm1421 = vweird.f32 %v1414
  %vm1422 = vweird.f32 %v1415
  %vm1423 = vmor %vm1421, %vm1422
  %v1424 = vsel %vm1423, %v1415, %v1420
  %v1425 = vmul.f32 %v1404, %v1424
  %v1426 = vmul.f32 %v1425, 0.5
  %v1427 = vtanh.pop %v1426
  %v1428 = vmul.f32 %v1427, 0.5
  %v1429 = vadd.f32 %v1428, 0.5
  %v1430 = vmul.f32 %v1248, %v1429
  %v1431 = vadd.f32 %v1251, %v1430
  %v1432 = vmul.f32 %v1392, %v1431
  %v1433 = vld [vmem:[%s12] sm:$0x1]
  %v1435 = vperm.slane %v1433, 0
  %v1437 = vmul.f32 %v1432, %v1435
  %v1438 = vsel %vm1395, %v1437, 0.0
  %1439 = vadd.xlane.f32.xlu0 %v1438
  %v1440 = vpop.xlane.xlu0 %1439
  %v1441 = vld [vmem:[#allocation3] sm:$0x1]
  %v1443 = vperm.slane %v1441, 0
  %v1445 = vadd.f32 %v1440, %v1443
  %v1446 = vmul.f32 %v1445, 0.5
  %v1447 = vtanh.pop %v1446
  %v1448 = vmul.f32 %v1447, 0.5
  %v1449 = vadd.f32 %v1448, 0.5
  %vm1450 = vcmask 7168
  %1451 = vst.msk [vmem:[%s16] sm:$0xff] %vm1450, %v1449
  // Predicated region
  $region66: #{tpu_custom_call.1} parent=0 // pred_check
    _
  $region67: #{tpu_custom_call.1} parent=0 // pred_check_branch
    %1453 = sbr.rel (0) target = $region69
  $region68: #{tpu_custom_call.1} parent=0 // pred_region
    _
  $region69: #{tpu_custom_call.1} parent=0 // pred_fallthru
    _
  // Predicated region
  $region70: #{tpu_custom_call.1} parent=0 // pred_check
    _
  $region71: #{tpu_custom_call.1} parent=0 // pred_check_branch
    %1455 = sbr.rel (0) target = $region73
  $region72: #{tpu_custom_call.1} parent=0 // pred_region
    _
  $region73: #{tpu_custom_call.1} parent=0 // pred_fallthru
    _

</llo_original>
